<compile_context>
chip_gen: v7x
topology: tpu7x:2x2x1
jax: 0.10.0
libtpu: 0.0.40
codegen_flags: <defaults>
</compile_context>

<pallas_src>
import functools
import math

import jax
import jax.numpy as jnp
from jax.experimental import pallas as pl
from jax.experimental.pallas import tpu as pltpu


_GROUPS = 8  # edges packed per output row (sublane -> lane packing factor)


def _round_up(x, m):
    return ((x + m - 1) // m) * m


def _cdiv(a, b):
    return -(-a // b)


def _bessel_kernel(dist_ref, expand_ref, freq_ref, out_ref, *,
                   inv_cutoff, p, a, b, c, groups, num_radial, mxu_expand):
    # dist_ref  : (rows, G)     -- G edges per packed row
    # expand_ref: (G, G*R)      -- one-hot expansion matrix, resident in VMEM
    # freq_ref  : (1, G*R)      -- freq tiled G times, resident in VMEM
    # out_ref   : (rows, G*R)   -- lane-dense packed output
    d = dist_ref[...].astype(jnp.float32) * inv_cutoff                # (rows, G)

    if mxu_expand:
        # Expand each per-row distance across its R-lane group on the MXU:
        #   x[j, g*R + r] = d[j, g]     via     x = d @ E  (E one-hot).
        # The MXU / vector-extended slot is idle in this kernel, so this takes
        # the expansion off the saturated VALU/XLU slots.  Split d into
        # bf16-exact hi/mid/lo pieces so the result is f32-accurate even if
        # the f32 matmul is emulated with truncating bf16 passes.
        e = expand_ref[...]                                           # (G, G*R)
        d_hi = d.astype(jnp.bfloat16).astype(jnp.float32)
        res = d - d_hi
        d_mid = res.astype(jnp.bfloat16).astype(jnp.float32)
        d_lo = res - d_mid
        x = (jnp.dot(d_hi, e, preferred_element_type=jnp.float32)
             + jnp.dot(d_mid, e, preferred_element_type=jnp.float32)
             + jnp.dot(d_lo, e, preferred_element_type=jnp.float32))  # (rows, G*R)
    else:
        # Fallback expansion: 8 lane-broadcasts + concat (XLU/VALU heavy).
        rows = d.shape[0]
        x = jnp.concatenate(
            [jnp.broadcast_to(d[:, g:g + 1], (rows, num_radial))
             for g in range(groups)],
            axis=-1)                                                  # (rows, G*R)

    freq = freq_ref[...].astype(jnp.float32)                          # (1, G*R)

    # Envelope, Horner form: 1/x + x^p * (a + x*(b + c*x)), zeroed for x >= 1.
    inv_x = pl.reciprocal(x, approx=True)        # EUP slot
    inv_x = inv_x * (2.0 - x * inv_x)            # one Newton step -> ~f32 accurate
    x_pow_p = x ** p                             # static int p -> integer_pow (muls)
    env = inv_x + x_pow_p * (a + x * (b + c * x))
    env = jnp.where(x < 1.0, env, 0.0)

    # freq is a learned parameter, so the harmonic sin-recurrence trick is not
    # generally valid; keep the true transcendental.
    out_ref[...] = (env * jnp.sin(freq * x)).astype(out_ref.dtype)


def bessel_basis_layer(dist, freq, *, cutoff=5.0, envelope_exponent=5,
                       block_edges=32768, out_dtype=None):
    """Pallas equivalent of BesselBasisLayer.forward(dist).

    dist: (N,) distances.  freq: (R,) learned frequencies (init pi*[1..R]).
    Returns (N, R) = envelope(dist/cutoff) * sin(freq * dist/cutoff).

    block_edges: edges per grid step (default 32768 keeps per-step pipeline
      overhead <~10% while the VMEM footprint stays below v7x's 64 MiB).
    out_dtype: pass jnp.bfloat16 to halve output bytes (biggest lever on the
      write-bandwidth-limited v5e) when the consumer accepts it.
    """
    n = dist.shape[0]
    r = freq.shape[0]
    g = _GROUPS
    lanes = g * r
    if out_dtype is None:
        out_dtype = dist.dtype

    p = int(envelope_exponent)
    a = -(p + 1) * (p + 2) / 2.0
    b = float(p * (p + 2))
    c = -p * (p + 1) / 2.0

    # --- tiling over edges ---------------------------------------------------
    min_block = 8 * g                       # one (8-sublane, G-lane) packed tile
    n_min = _round_up(n, min_block)
    be = _round_up(max(int(block_edges), min_block), min_block)
    be = min(be, n_min)
    num_steps = _cdiv(n_min, be)
    if num_steps == 1 and n_min >= 2 * min_block:
        num_steps = 2                       # >= 2 steps so both v7x TCs get work
    if num_steps > 1 and num_steps % 2:
        num_steps += 1                      # even step count balances the 2 TCs
    be = _round_up(_cdiv(n_min, num_steps), min_block)
    n_pad = _round_up(n_min, be)
    block_rows = be // g
    grid = (n_pad // be,)

    # --- pack inputs -----------------------------------------------------------
    if n_pad != n:
        # Pad past the cutoff: envelope masks padded rows to 0, 1/x stays finite.
        pad = jnp.full((n_pad - n,), 2.0 * float(cutoff), dtype=dist.dtype)
        dist = jnp.concatenate([dist, pad])
    dist2 = dist.reshape(n_pad // g, g)
    freq_tiled = jnp.tile(freq.astype(jnp.float32).reshape(1, r), (1, g))  # (1, G*R)
    # One-hot expansion matrix E[g, g*R + r] = 1.
    expand = jnp.repeat(jnp.eye(g, dtype=jnp.float32), r, axis=1)          # (G, G*R)

    # --- VMEM budget / cost estimate -------------------------------------------
    out_isize = jnp.dtype(out_dtype).itemsize
    lane_pad = _round_up(lanes, 128)
    out_tile = block_rows * lane_pad * out_isize     # lane-dense out tile
    dist_tile = block_rows * 128 * 4                 # (rows, G) lane-padded to 128
    interm = 16 * block_rows * lane_pad * 4          # Mosaic f32 temporaries headroom
    vmem_limit = max(2 * (out_tile + dist_tile) + interm + (4 << 20), 8 << 20)

    cost = pl.CostEstimate(
        flops=int(32 * n_pad * r),
        transcendentals=int(2 * n_pad * r),
        bytes_accessed=int(n_pad * jnp.dtype(dist.dtype).itemsize
                           + n_pad * r * out_isize))

    def _call(mxu_expand):
        kernel = functools.partial(
            _bessel_kernel, inv_cutoff=1.0 / float(cutoff), p=p, a=a, b=b, c=c,
            groups=g, num_radial=r, mxu_expand=mxu_expand)
        return pl.pallas_call(
            kernel,
            out_shape=jax.ShapeDtypeStruct((n_pad // g, lanes), out_dtype),
            grid=grid,
            in_specs=[
                pl.BlockSpec((block_rows, g), lambda i: (i, 0)),
                pl.BlockSpec((g, lanes), lambda i: (0, 0)),   # resident across steps
                pl.BlockSpec((1, lanes), lambda i: (0, 0)),   # resident across steps
            ],
            out_specs=pl.BlockSpec((block_rows, lanes), lambda i: (i, 0)),
            compiler_params=pltpu.CompilerParams(
                dimension_semantics=("parallel",),
                vmem_limit_bytes=int(vmem_limit)),
            cost_estimate=cost,
        )(dist2, expand, freq_tiled)

    try:
        out_packed = _call(True)    # fast path: MXU-based lane expansion
    except Exception:               # robustness guard: small-K f32 matmul lowering
        out_packed = _call(False)   # fallback: VALU/XLU broadcast+concat expansion

    # (n_pad//G, G*R) row-major == (n_pad, R) row-major: free reshape.
    return out_packed.reshape(n_pad, r)[:n]


def _reference(dist, freq, cutoff=5.0, envelope_exponent=5):
    """Pure-JAX reference mirroring the PyTorch module."""
    p = envelope_exponent
    a = -(p + 1) * (p + 2) / 2.0
    b = float(p * (p + 2))
    c = -p * (p + 1) / 2.0
    x = dist[:, None] / cutoff
    xp0 = x ** p
    xp1 = xp0 * x
    xp2 = xp1 * x
    env = 1.0 / x + a * xp0 + b * xp1 + c * xp2
    env = jnp.where(x < 1.0, env, jnp.zeros_like(x))
    return env * jnp.sin(freq[None, :] * x)


if __name__ == "__main__":
    num_radial = 16
    cutoff = 5.0
    envelope_exponent = 5

    # Parameter init exactly as the PyTorch module: freq = pi * [1..num_radial].
    freq = jnp.arange(1, num_radial + 1, dtype=jnp.float32) * math.pi

    # Deterministic distances covering both x < 1 (inside cutoff) and x >= 1.
    key = jax.random.PRNGKey(0)
    n_edges = 1000   # not a multiple of 8 -> padding path; auto-split into 2 steps
    dist = jax.random.uniform(key, (n_edges,), dtype=jnp.float32,
                              minval=0.5, maxval=6.0)

    out = jax.block_until_ready(
        bessel_basis_layer(dist, freq, cutoff=cutoff,
                           envelope_exponent=envelope_exponent))
    ref = _reference(dist, freq, cutoff, envelope_exponent)
    assert out.shape == (n_edges, num_radial)
    assert jnp.allclose(out, ref, atol=1e-4, rtol=1e-4), (
        "mismatch vs reference, max abs err = %g"
        % float(jnp.max(jnp.abs(out - ref))))

    # Multi-step grid with a small explicit block (exercises > 2 grid steps).
    out_multi = jax.block_until_ready(
        bessel_basis_layer(dist, freq, cutoff=cutoff,
                           envelope_exponent=envelope_exponent, block_edges=256))
    assert jnp.allclose(out_multi, ref, atol=1e-4, rtol=1e-4)

    # Tiny-N path: a single minimal full-extent block.
    dist_small = jax.random.uniform(jax.random.PRNGKey(1), (8,),
                                    dtype=jnp.float32, minval=0.5, maxval=6.0)
    out_small = jax.block_until_ready(
        bessel_basis_layer(dist_small, freq, cutoff=cutoff,
                           envelope_exponent=envelope_exponent))
    ref_small = _reference(dist_small, freq, cutoff, envelope_exponent)
    assert out_small.shape == (8, num_radial)
    assert jnp.allclose(out_small, ref_small, atol=1e-4, rtol=1e-4)

    print("KERNEL_OK")
</pallas_src>

<mosaic_0001>
module attributes {stable_mosaic.version = 11 : i64} {
  func.func @_bessel_kernel(%arg0: i32, %arg1: memref<64x8xf32, #tpu.memory_space<vmem>>, %arg2: memref<8x128xf32, #tpu.memory_space<vmem>>, %arg3: memref<1x128xf32, #tpu.memory_space<vmem>>, %arg4: memref<64x128xf32, #tpu.memory_space<vmem>>) attributes {dimension_semantics = [#tpu.dimension_semantics<parallel>], iteration_bounds = array<i64: 2>, scalar_prefetch = 0 : i64, scratch_operands = 0 : i64, tpu.core_type = #tpu.core_type<tc>, window_params = [{transform_indices = @transform_0, window_bounds = array<i64: 64, 8>}, {pipeline_mode = #tpu.pipeline_mode<synchronous>, transform_indices = @transform_1, window_bounds = array<i64: 8, 128>}, {pipeline_mode = #tpu.pipeline_mode<synchronous>, transform_indices = @transform_2, window_bounds = array<i64: 1, 128>}, {transform_indices = @transform_3, window_bounds = array<i64: 64, 128>}]} {
    %c0 = arith.constant 0 : index
    %c0_0 = arith.constant 0 : index
    %0 = vector.load %arg1[%c0, %c0_0] : memref<64x8xf32, #tpu.memory_space<vmem>>, vector<64x8xf32>
    %cst = arith.constant 2.000000e-01 : f32
    %1 = vector.broadcast %cst : f32 to vector<64x8xf32>
    %2 = arith.mulf %0, %1 : vector<64x8xf32>
    %c0_1 = arith.constant 0 : index
    %c0_2 = arith.constant 0 : index
    %3 = vector.load %arg2[%c0_1, %c0_2] : memref<8x128xf32, #tpu.memory_space<vmem>>, vector<8x128xf32>
    %4 = arith.truncf %2 : vector<64x8xf32> to vector<64x8xbf16>
    %5 = arith.extf %4 : vector<64x8xbf16> to vector<64x8xf32>
    %6 = arith.subf %2, %5 : vector<64x8xf32>
    %7 = arith.truncf %6 : vector<64x8xf32> to vector<64x8xbf16>
    %8 = arith.extf %7 : vector<64x8xbf16> to vector<64x8xf32>
    %9 = arith.subf %6, %8 : vector<64x8xf32>
    %cst_3 = arith.constant dense<0.000000e+00> : vector<64x128xf32>
    %10 = tpu.matmul %5, %3, %cst_3 {dimension_numbers = #tpu.dot_dimension_numbers<[1], [0], [0], [1], [0, 0, 1, 1], [], []>} : vector<64x8xf32>, vector<8x128xf32>, vector<64x128xf32> -> vector<64x128xf32>
    %cst_4 = arith.constant dense<0.000000e+00> : vector<64x128xf32>
    %11 = tpu.matmul %8, %3, %cst_4 {dimension_numbers = #tpu.dot_dimension_numbers<[1], [0], [0], [1], [0, 0, 1, 1], [], []>} : vector<64x8xf32>, vector<8x128xf32>, vector<64x128xf32> -> vector<64x128xf32>
    %12 = arith.addf %10, %11 : vector<64x128xf32>
    %cst_5 = arith.constant dense<0.000000e+00> : vector<64x128xf32>
    %13 = tpu.matmul %9, %3, %cst_5 {dimension_numbers = #tpu.dot_dimension_numbers<[1], [0], [0], [1], [0, 0, 1, 1], [], []>} : vector<64x8xf32>, vector<8x128xf32>, vector<64x128xf32> -> vector<64x128xf32>
    %14 = arith.addf %12, %13 : vector<64x128xf32>
    %c0_6 = arith.constant 0 : index
    %c0_7 = arith.constant 0 : index
    %15 = vector.load %arg3[%c0_6, %c0_7] : memref<1x128xf32, #tpu.memory_space<vmem>>, vector<1x128xf32>
    %16 = tpu.reciprocal %14 {approx = true} : vector<64x128xf32> -> vector<64x128xf32>
    %17 = arith.mulf %14, %16 : vector<64x128xf32>
    %cst_8 = arith.constant 2.000000e+00 : f32
    %18 = vector.broadcast %cst_8 : f32 to vector<64x128xf32>
    %19 = arith.subf %18, %17 : vector<64x128xf32>
    %20 = arith.mulf %16, %19 : vector<64x128xf32>
    %21 = arith.mulf %14, %14 : vector<64x128xf32>
    %22 = arith.mulf %21, %21 : vector<64x128xf32>
    %23 = arith.mulf %14, %22 : vector<64x128xf32>
    %cst_9 = arith.constant -1.500000e+01 : f32
    %24 = vector.broadcast %cst_9 : f32 to vector<64x128xf32>
    %25 = arith.mulf %24, %14 : vector<64x128xf32>
    %cst_10 = arith.constant 3.500000e+01 : f32
    %26 = vector.broadcast %cst_10 : f32 to vector<64x128xf32>
    %27 = arith.addf %26, %25 : vector<64x128xf32>
    %28 = arith.mulf %14, %27 : vector<64x128xf32>
    %cst_11 = arith.constant -2.100000e+01 : f32
    %29 = vector.broadcast %cst_11 : f32 to vector<64x128xf32>
    %30 = arith.addf %29, %28 : vector<64x128xf32>
    %31 = arith.mulf %23, %30 : vector<64x128xf32>
    %32 = arith.addf %20, %31 : vector<64x128xf32>
    %cst_12 = arith.constant 1.000000e+00 : f32
    %33 = vector.broadcast %cst_12 : f32 to vector<64x128xf32>
    %34 = arith.cmpf olt, %14, %33 : vector<64x128xf32>
    %cst_13 = arith.constant 0.000000e+00 : f32
    %35 = vector.broadcast %cst_13 : f32 to vector<64x128xf32>
    %36 = arith.select %34, %32, %35 : vector<64x128xi1>, vector<64x128xf32>
    %37 = vector.broadcast %15 : vector<1x128xf32> to vector<64x128xf32>
    %38 = arith.mulf %37, %14 : vector<64x128xf32>
    %39 = math.sin %38 : vector<64x128xf32>
    %40 = arith.mulf %36, %39 : vector<64x128xf32>
    %c0_14 = arith.constant 0 : index
    %c0_15 = arith.constant 0 : index
    %41 = vector.load %arg4[%c0_14, %c0_15] : memref<64x128xf32, #tpu.memory_space<vmem>>, vector<64x128xf32>
    tpu.vector_store %arg4[%c0_14, %c0_15], %40 {strides = array<i32>} : memref<64x128xf32, #tpu.memory_space<vmem>>, vector<64x128xf32>,
    return
  }
  func.func @transform_0(%arg0: i32) -> (i32, i32) {
    %c0_i32 = arith.constant 0 : i32
    %c0_i32_0 = arith.constant 0 : i32
    return %arg0, %c0_i32 : i32, i32
  }
  func.func @transform_1(%arg0: i32) -> (i32, i32) {
    %c0_i32 = arith.constant 0 : i32
    %c0_i32_0 = arith.constant 0 : i32
    %c0_i32_1 = arith.constant 0 : i32
    return %c0_i32, %c0_i32_0 : i32, i32
  }
  func.func @transform_2(%arg0: i32) -> (i32, i32) {
    %c0_i32 = arith.constant 0 : i32
    %c0_i32_0 = arith.constant 0 : i32
    %c0_i32_1 = arith.constant 0 : i32
    return %c0_i32, %c0_i32_0 : i32, i32
  }
  func.func @transform_3(%arg0: i32) -> (i32, i32) {
    %c0_i32 = arith.constant 0 : i32
    %c0_i32_0 = arith.constant 0 : i32
    return %arg0, %c0_i32 : i32, i32
  }
}

module attributes {stable_mosaic.version = 11 : i64} {
  func.func @_bessel_kernel(%arg0: i32, %arg1: memref<64x8xf32, #tpu.memory_space<vmem>>, %arg2: memref<8x128xf32, #tpu.memory_space<vmem>>, %arg3: memref<1x128xf32, #tpu.memory_space<vmem>>, %arg4: memref<64x128xf32, #tpu.memory_space<vmem>>) attributes {dimension_semantics = [#tpu.dimension_semantics<parallel>], iteration_bounds = array<i64: 2>, scalar_prefetch = 0 : i64, scratch_operands = 0 : i64, tpu.core_type = #tpu.core_type<tc>, window_params = [{transform_indices = @transform_0, window_bounds = array<i64: 64, 8>}, {pipeline_mode = #tpu.pipeline_mode<synchronous>, transform_indices = @transform_1, window_bounds = array<i64: 8, 128>}, {pipeline_mode = #tpu.pipeline_mode<synchronous>, transform_indices = @transform_2, window_bounds = array<i64: 1, 128>}, {transform_indices = @transform_3, window_bounds = array<i64: 64, 128>}]} {
    %c0 = arith.constant 0 : index
    %c0_0 = arith.constant 0 : index
    %0 = vector.load %arg1[%c0, %c0_0] : memref<64x8xf32, #tpu.memory_space<vmem>>, vector<64x8xf32>
    %cst = arith.constant 2.000000e-01 : f32
    %1 = vector.broadcast %cst : f32 to vector<64x8xf32>
    %2 = arith.mulf %0, %1 : vector<64x8xf32>
    %3 = vector.extract_strided_slice %2 {offsets = [0, 0], sizes = [64, 1], strides = [1, 1]} : vector<64x8xf32> to vector<64x1xf32>
    %4 = vector.shape_cast %3 : vector<64x1xf32> to vector<64x1xf32>
    %5 = vector.broadcast %4 : vector<64x1xf32> to vector<64x16xf32>
    %6 = vector.extract_strided_slice %2 {offsets = [0, 1], sizes = [64, 1], strides = [1, 1]} : vector<64x8xf32> to vector<64x1xf32>
    %7 = vector.shape_cast %6 : vector<64x1xf32> to vector<64x1xf32>
    %8 = vector.broadcast %7 : vector<64x1xf32> to vector<64x16xf32>
    %9 = vector.extract_strided_slice %2 {offsets = [0, 2], sizes = [64, 1], strides = [1, 1]} : vector<64x8xf32> to vector<64x1xf32>
    %10 = vector.shape_cast %9 : vector<64x1xf32> to vector<64x1xf32>
    %11 = vector.broadcast %10 : vector<64x1xf32> to vector<64x16xf32>
    %12 = vector.extract_strided_slice %2 {offsets = [0, 3], sizes = [64, 1], strides = [1, 1]} : vector<64x8xf32> to vector<64x1xf32>
    %13 = vector.shape_cast %12 : vector<64x1xf32> to vector<64x1xf32>
    %14 = vector.broadcast %13 : vector<64x1xf32> to vector<64x16xf32>
    %15 = vector.extract_strided_slice %2 {offsets = [0, 4], sizes = [64, 1], strides = [1, 1]} : vector<64x8xf32> to vector<64x1xf32>
    %16 = vector.shape_cast %15 : vector<64x1xf32> to vector<64x1xf32>
    %17 = vector.broadcast %16 : vector<64x1xf32> to vector<64x16xf32>
    %18 = vector.extract_strided_slice %2 {offsets = [0, 5], sizes = [64, 1], strides = [1, 1]} : vector<64x8xf32> to vector<64x1xf32>
    %19 = vector.shape_cast %18 : vector<64x1xf32> to vector<64x1xf32>
    %20 = vector.broadcast %19 : vector<64x1xf32> to vector<64x16xf32>
    %21 = vector.extract_strided_slice %2 {offsets = [0, 6], sizes = [64, 1], strides = [1, 1]} : vector<64x8xf32> to vector<64x1xf32>
    %22 = vector.shape_cast %21 : vector<64x1xf32> to vector<64x1xf32>
    %23 = vector.broadcast %22 : vector<64x1xf32> to vector<64x16xf32>
    %24 = vector.extract_strided_slice %2 {offsets = [0, 7], sizes = [64, 1], strides = [1, 1]} : vector<64x8xf32> to vector<64x1xf32>
    %25 = vector.shape_cast %24 : vector<64x1xf32> to vector<64x1xf32>
    %26 = vector.broadcast %25 : vector<64x1xf32> to vector<64x16xf32>
    %27 = tpu.concatenate %5, %8, %11, %14, %17, %20, %23, %26 in 1 : vector<64x16xf32>, vector<64x16xf32>, vector<64x16xf32>, vector<64x16xf32>, vector<64x16xf32>, vector<64x16xf32>, vector<64x16xf32>, vector<64x16xf32> -> vector<64x128xf32>
    %c0_1 = arith.constant 0 : index
    %c0_2 = arith.constant 0 : index
    %28 = vector.load %arg3[%c0_1, %c0_2] : memref<1x128xf32, #tpu.memory_space<vmem>>, vector<1x128xf32>
    %29 = tpu.reciprocal %27 {approx = true} : vector<64x128xf32> -> vector<64x128xf32>
    %30 = arith.mulf %27, %29 : vector<64x128xf32>
    %cst_3 = arith.constant 2.000000e+00 : f32
    %31 = vector.broadcast %cst_3 : f32 to vector<64x128xf32>
    %32 = arith.subf %31, %30 : vector<64x128xf32>
    %33 = arith.mulf %29, %32 : vector<64x128xf32>
    %34 = arith.mulf %27, %27 : vector<64x128xf32>
    %35 = arith.mulf %34, %34 : vector<64x128xf32>
    %36 = arith.mulf %27, %35 : vector<64x128xf32>
    %cst_4 = arith.constant -1.500000e+01 : f32
    %37 = vector.broadcast %cst_4 : f32 to vector<64x128xf32>
    %38 = arith.mulf %37, %27 : vector<64x128xf32>
    %cst_5 = arith.constant 3.500000e+01 : f32
    %39 = vector.broadcast %cst_5 : f32 to vector<64x128xf32>
    %40 = arith.addf %39, %38 : vector<64x128xf32>
    %41 = arith.mulf %27, %40 : vector<64x128xf32>
    %cst_6 = arith.constant -2.100000e+01 : f32
    %42 = vector.broadcast %cst_6 : f32 to vector<64x128xf32>
    %43 = arith.addf %42, %41 : vector<64x128xf32>
    %44 = arith.mulf %36, %43 : vector<64x128xf32>
    %45 = arith.addf %33, %44 : vector<64x128xf32>
    %cst_7 = arith.constant 1.000000e+00 : f32
    %46 = vector.broadcast %cst_7 : f32 to vector<64x128xf32>
    %47 = arith.cmpf olt, %27, %46 : vector<64x128xf32>
    %cst_8 = arith.constant 0.000000e+00 : f32
    %48 = vector.broadcast %cst_8 : f32 to vector<64x128xf32>
    %49 = arith.select %47, %45, %48 : vector<64x128xi1>, vector<64x128xf32>
    %50 = vector.broadcast %28 : vector<1x128xf32> to vector<64x128xf32>
    %51 = arith.mulf %50, %27 : vector<64x128xf32>
    %52 = math.sin %51 : vector<64x128xf32>
    %53 = arith.mulf %49, %52 : vector<64x128xf32>
    %c0_9 = arith.constant 0 : index
    %c0_10 = arith.constant 0 : index
    %54 = vector.load %arg4[%c0_9, %c0_10] : memref<64x128xf32, #tpu.memory_space<vmem>>, vector<64x128xf32>
    tpu.vector_store %arg4[%c0_9, %c0_10], %53 {strides = array<i32>} : memref<64x128xf32, #tpu.memory_space<vmem>>, vector<64x128xf32>,
    return
  }
  func.func @transform_0(%arg0: i32) -> (i32, i32) {
    %c0_i32 = arith.constant 0 : i32
    %c0_i32_0 = arith.constant 0 : i32
    return %arg0, %c0_i32 : i32, i32
  }
  func.func @transform_1(%arg0: i32) -> (i32, i32) {
    %c0_i32 = arith.constant 0 : i32
    %c0_i32_0 = arith.constant 0 : i32
    %c0_i32_1 = arith.constant 0 : i32
    return %c0_i32, %c0_i32_0 : i32, i32
  }
  func.func @transform_2(%arg0: i32) -> (i32, i32) {
    %c0_i32 = arith.constant 0 : i32
    %c0_i32_0 = arith.constant 0 : i32
    %c0_i32_1 = arith.constant 0 : i32
    return %c0_i32, %c0_i32_0 : i32, i32
  }
  func.func @transform_3(%arg0: i32) -> (i32, i32) {
    %c0_i32 = arith.constant 0 : i32
    %c0_i32_0 = arith.constant 0 : i32
    return %arg0, %c0_i32 : i32, i32
  }
}

</mosaic_0001>

<llo_original>
// kernel: tpu_custom_call.1
$region0: #{tpu_custom_call.1}
  #allocation0 [shape = 'u32[]', space=smem, size = 0x4, offset = 0x4, fixed_abs, tag = 'smem constant byte address 0x4 - core index']
  #allocation1 [shape = 'u32[144,128]{1,0:T(1,128)}', space=vmem, size = 0x12000, scoped, tag = 'internal scratch']
  %s0 = inlined_call_operand.vmem [shape: f32[128,8], index: 0, kind: input, shape index: {}]
  %s1 = inlined_call_operand.vmem [shape: f32[8,128], index: 1, kind: input, shape index: {}]
  %s2 = inlined_call_operand.vmem [shape: f32[1,128], index: 2, kind: input, shape index: {}]
  %s3 = inlined_call_operand.hbm [shape: f32[128,128], index: 3, kind: output, shape index: {}]
  %s4 = sld [smem:[#allocation0]]
  $region45: #{tpu_custom_call.1} parent=0
    _
  %s6 = ssub.s32 1, %s4
  %s7 = scalar_select 0, %s6, %s4
  $region1: #{tpu_custom_call.1} parent=0
    #allocation2 [shape = 'u8[65536]{0}', space=vmem, size = 0x10000, scoped, tag = 'output window, operand 0']
    #allocation3 [shape = 's32[2]{0}', space=sflag, size = 0x8, scoped, tag = 'scoped memory for tpu_custom_call.1']
    %8 = vsyncpa [#allocation3], 0
    %s9 = scalar_lea.sflag [#allocation3], 1
    %10 = vsyncpa %s9, 0
    loop: start=0, step=1, limit=4
    $region2: #{tpu_custom_call.1} parent=1 // loop_pre_header
      _
    $region3: #{tpu_custom_call.1} parent=1 // loop_header
      %s12 = sphi 0, %s16
      %p13 = scmp.ge.s32.totalorder %s12, 4
      %s22 = sphi 0, %s24
      %s25 = sphi 0, %s22
      %s26 = sphi 0, %s25
      %s42 = sphi 0, %s26
      %s46 = sphi 0, %s46
      %s48 = sphi 0, %s46
      %s49 = sphi 0, %s48
      %s63 = sphi 0, %s49
      %s67 = sphi 0, %s67
      %s69 = sphi 0, %s67
      %s70 = sphi 0, %s69
      %s84 = sphi 0, %s70
      %s90 = sphi 0, %s92
      %s93 = sphi 0, %s90
      %s94 = sphi 0, %s93
      %s110 = sphi 0, %s94
    $region4: #{tpu_custom_call.1} parent=1 // loop_header_branch
      %15 = sbr.rel (%p13) target = $region8
    $region5: #{tpu_custom_call.1} parent=1 // loop_body
      %s17 = ssub.s32 %s12, 1
      %s18 = ssub.s32 %s12, 2
      %s19 = sadd.s32 %s12, 1
      %s20 = ssub.s32 %s12, %s19
      %p21 = scmp.eq.s32.totalorder %s20, 0
      %s23 = sadd.s32 %s22, 1
      %s24 = scalar_select %p21, %s22, %s23
      %p27 = pneg %p21
      %p28 = scmp.eq.s32.totalorder %s12, 1
      %p29 = por %p27, %p28
      %p30 = scmp.ne.s32.totalorder %s22, %s25
      %p31 = scmp.eq.s32.totalorder %s12, 0
      %p32 = por %p30, %p31
      %p33 = scmp.ne.s32.totalorder %s22, %s25
      %p34 = scmp.eq.s32.totalorder %s17, 1
      %p35 = por %p33, %p34
      %p36 = scmp.ne.s32.totalorder %s25, %s26
      %p37 = scmp.eq.s32.totalorder %s17, 0
      %p38 = por %p36, %p37
      %p39 = scmp.ne.s32.totalorder %s25, %s26
      %p40 = scmp.eq.s32.totalorder %s18, 1
      %p41 = por %p39, %p40
      %p43 = scmp.ne.s32.totalorder %s26, %s42
      %p44 = scmp.eq.s32.totalorder %s18, 0
      %p45 = por %p43, %p44
      %s47 = sadd.s32 %s46, 1
      %p50 = scmp.eq.s32.totalorder %s12, 1
      %p51 = scmp.ne.s32.totalorder %s46, %s48
      %p52 = scmp.eq.s32.totalorder %s12, 0
      %p53 = por %p51, %p52
      %p54 = scmp.ne.s32.totalorder %s46, %s48
      %p55 = scmp.eq.s32.totalorder %s17, 1
      %p56 = por %p54, %p55
      %p57 = scmp.ne.s32.totalorder %s48, %s49
      %p58 = scmp.eq.s32.totalorder %s17, 0
      %p59 = por %p57, %p58
      %p60 = scmp.ne.s32.totalorder %s48, %s49
      %p61 = scmp.eq.s32.totalorder %s18, 1
      %p62 = por %p60, %p61
      %p64 = scmp.ne.s32.totalorder %s49, %s63
      %p65 = scmp.eq.s32.totalorder %s18, 0
      %p66 = por %p64, %p65
      %s68 = sadd.s32 %s67, 1
      %p71 = scmp.eq.s32.totalorder %s12, 1
      %p72 = scmp.ne.s32.totalorder %s67, %s69
      %p73 = scmp.eq.s32.totalorder %s12, 0
      %p74 = por %p72, %p73
      %p75 = scmp.ne.s32.totalorder %s67, %s69
      %p76 = scmp.eq.s32.totalorder %s17, 1
      %p77 = por %p75, %p76
      %p78 = scmp.ne.s32.totalorder %s69, %s70
      %p79 = scmp.eq.s32.totalorder %s17, 0
      %p80 = por %p78, %p79
      %p81 = scmp.ne.s32.totalorder %s69, %s70
      %p82 = scmp.eq.s32.totalorder %s18, 1
      %p83 = por %p81, %p82
      %p85 = scmp.ne.s32.totalorder %s70, %s84
      %p86 = scmp.eq.s32.totalorder %s18, 0
      %p87 = por %p85, %p86
      %s88 = ssub.s32 %s12, %s19
      %p89 = scmp.eq.s32.totalorder %s88, 0
      %s91 = sadd.s32 %s90, 1
      %s92 = scalar_select %p89, %s90, %s91
      %p95 = pneg %p89
      %p96 = scmp.eq.s32.totalorder %s12, 1
      %p97 = por %p95, %p96
      %p98 = scmp.ne.s32.totalorder %s90, %s93
      %p99 = scmp.eq.s32.totalorder %s12, 0
      %p100 = por %p98, %p99
      %p101 = scmp.ne.s32.totalorder %s90, %s93
      %p102 = scmp.eq.s32.totalorder %s17, 1
      %p103 = por %p101, %p102
      %p104 = scmp.ne.s32.totalorder %s93, %s94
      %p105 = scmp.eq.s32.totalorder %s17, 0
      %p106 = por %p104, %p105
      %p107 = scmp.ne.s32.totalorder %s93, %s94
      %p108 = scmp.eq.s32.totalorder %s18, 1
      %p109 = por %p107, %p108
      %p111 = scmp.ne.s32.totalorder %s94, %s110
      %p112 = scmp.eq.s32.totalorder %s18, 0
      %p113 = por %p111, %p112
      %p114 = scmp.le.s32.totalorder 1, %s12
      %p115 = scmp.lt.s32.totalorder %s12, 3
      %p116 = pnand %p114, %p115
      %p117 = pneg %p116
      // Predicated region
      $region9: #{tpu_custom_call.1} parent=5 // pred_check
        _
      $region10: #{tpu_custom_call.1} parent=5 // pred_check_branch
        %119 = sbr.rel (%p116) target = $region12
      $region11: #{tpu_custom_call.1} parent=5 // pred_region
        %s120 = ssub.s32 %s12, 1
        // Predicated region
        $region13: #{tpu_custom_call.1} parent=11 // pred_check
          %p121 = pneg %p59
        $region14: #{tpu_custom_call.1} parent=11 // pred_check_branch
          %123 = sbr.rel (%p121) target = $region16
        $region15: #{tpu_custom_call.1} parent=11 // pred_region
          _
        $region16: #{tpu_custom_call.1} parent=11 // pred_fallthru
          _
        // Predicated region
        $region17: #{tpu_custom_call.1} parent=11 // pred_check
          %p124 = pneg %p80
        $region18: #{tpu_custom_call.1} parent=11 // pred_check_branch
          %126 = sbr.rel (%p124) target = $region20
        $region19: #{tpu_custom_call.1} parent=11 // pred_region
          _
        $region20: #{tpu_custom_call.1} parent=11 // pred_fallthru
          _
      $region12: #{tpu_custom_call.1} parent=5 // pred_fallthru
        _
      %p127 = scmp.lt.s32.totalorder %s12, 2
      // Predicated region
      $region21: #{tpu_custom_call.1} parent=5 // pred_check
        %p128 = pneg %p127
      $region22: #{tpu_custom_call.1} parent=5 // pred_check_branch
        %130 = sbr.rel (%p128) target = $region24
      $region23: #{tpu_custom_call.1} parent=5 // pred_region
        // Predicated region
        $region25: #{tpu_custom_call.1} parent=23 // pred_check
          %p131 = pneg %p32
        $region26: #{tpu_custom_call.1} parent=23 // pred_check_branch
          %133 = sbr.rel (%p131) target = $region28
        $region27: #{tpu_custom_call.1} parent=23 // pred_region
          %s134 = smul.u32 8, %s12
          %p135 = scmp.lt.s32.totalorder %s134, 15
          %s136 = scalar_select %p135, %s134, 15
          %s137 = smul.addr %s136, 8
          %s138 = scalar_lea.vmem %s0, %s137
          %s139 = smul.u32 8, %s12
        $region28: #{tpu_custom_call.1} parent=23 // pred_fallthru
          _
      $region24: #{tpu_custom_call.1} parent=5 // pred_fallthru
        _
      %p140 = scmp.le.s32.totalorder 1, %s12
      %p141 = scmp.lt.s32.totalorder %s12, 3
      %p142 = pnand %p140, %p141
      %p143 = pneg %p142
      // Predicated region
      $region29: #{tpu_custom_call.1} parent=5 // pred_check
        _
      $region30: #{tpu_custom_call.1} parent=5 // pred_check_branch
        %145 = sbr.rel (%p142) target = $region32
      $region31: #{tpu_custom_call.1} parent=5 // pred_region
        %s146 = ssub.s32 %s12, 1
        %s147 = smul.u32 8, %s17
        %p148 = scmp.lt.s32.totalorder %s147, 15
        %s149 = scalar_select %p148, %s147, 15
        %s150 = smul.addr %s149, 8
        %s151 = scalar_lea.vmem %s0, %s150
        %p152 = pneg %p38
        %p153 = pneg %p35
        %p154 = pneg %p59
        %p155 = pneg %p56
        %p156 = pneg %p80
        %p157 = pneg %p77
        %p158 = pneg %p106
        %p159 = pneg %p103
        %s160 = sand.u32 %s93, 1
        %s161 = scalar_lea.sflag [#allocation3], %s160
        %s162 = sand.u32 %s93, 1
        %s163 = smul.addr %s162, 64
        %s164 = scalar_lea.vmem [#allocation2], %s163
        %s165 = smul.u32 8, %s17
        %p166 = scmp.lt.s32.totalorder %s165, 15
        %s167 = scalar_select %p166, %s165, 15
        %s168 = smul.addr %s167, 8
        %s169 = scalar_lea.vmem %s0, %s168
        %s170 = smul.u32 8, %s17
        %s171 = smul.u32 8, %s17
        %v172 = vld [vmem:[%s169] sm:$0xff]
        %v173 = vld [vmem:[%s169 + $0x8] sm:$0xff]
        %v174 = vld [vmem:[%s169 + $0x10] sm:$0xff]
        %v175 = vld [vmem:[%s169 + $0x18] sm:$0xff]
        %v176 = vld [vmem:[%s169 + $0x20] sm:$0xff]
        %v177 = vld [vmem:[%s169 + $0x28] sm:$0xff]
        %v178 = vld [vmem:[%s169 + $0x30] sm:$0xff]
        %v179 = vld [vmem:[%s169 + $0x38] sm:$0xff]
        %v180 = vmul.f32 %v172, 0.2
        %v181 = vmul.f32 %v173, 0.2
        %v182 = vmul.f32 %v174, 0.2
        %v183 = vmul.f32 %v175, 0.2
        %v184 = vmul.f32 %v176, 0.2
        %v185 = vmul.f32 %v177, 0.2
        %v186 = vmul.f32 %v178, 0.2
        %v187 = vmul.f32 %v179, 0.2
        %v188 = vld [vmem:[%s1] sm:$0xff]
        %v189 = vpack.c.bf16 %v181, %v180
        %v190 = vpack.c.bf16 %v183, %v182
        %v191 = vpack.c.bf16 %v185, %v184
        %v192 = vpack.c.bf16 %v187, %v186
        %v193 = vunpack.c.l.bf16 %v189
        %v194 = vunpack.c.h.bf16 %v189
        %v195 = vunpack.c.l.bf16 %v190
        %v196 = vunpack.c.h.bf16 %v190
        %v197 = vunpack.c.l.bf16 %v191
        %v198 = vunpack.c.h.bf16 %v191
        %v199 = vunpack.c.l.bf16 %v192
        %v200 = vunpack.c.h.bf16 %v192
        %v201 = vsub.f32 %v180, %v193
        %v202 = vsub.f32 %v181, %v194
        %v203 = vsub.f32 %v182, %v195
        %v204 = vsub.f32 %v183, %v196
        %v205 = vsub.f32 %v184, %v197
        %v206 = vsub.f32 %v185, %v198
        %v207 = vsub.f32 %v186, %v199
        %v208 = vsub.f32 %v187, %v200
        %v209 = vpack.c.bf16 %v202, %v201
        %v210 = vpack.c.bf16 %v204, %v203
        %v211 = vpack.c.bf16 %v206, %v205
        %v212 = vpack.c.bf16 %v208, %v207
        %v213 = vunpack.c.l.bf16 %v209
        %v214 = vunpack.c.h.bf16 %v209
        %v215 = vunpack.c.l.bf16 %v210
        %v216 = vunpack.c.h.bf16 %v210
        %v217 = vunpack.c.l.bf16 %v211
        %v218 = vunpack.c.h.bf16 %v211
        %v219 = vunpack.c.l.bf16 %v212
        %v220 = vunpack.c.h.bf16 %v212
        %v221 = vsub.f32 %v201, %v213
        %v222 = vsub.f32 %v202, %v214
        %v223 = vsub.f32 %v203, %v215
        %v224 = vsub.f32 %v204, %v216
        %v225 = vsub.f32 %v205, %v217
        %v226 = vsub.f32 %v206, %v218
        %v227 = vsub.f32 %v207, %v219
        %v228 = vsub.f32 %v208, %v220
        %vm229 = vcmask 64512
        %v231 = vsel %vm229, %v213, 0
        %v234 = vsel %vm229, %v214, 0
        %v237 = vsel %vm229, %v215, 0
        %v240 = vsel %vm229, %v216, 0
        %v243 = vsel %vm229, %v217, 0
        %v246 = vsel %vm229, %v218, 0
        %v249 = vsel %vm229, %v219, 0
        %v252 = vsel %vm229, %v220, 0
        %254 = vmatprep.subr.mxu0 0.0
        %255 = vmatpush1.msra.mxu0 %v188
        %256 = vmatprep.subr.mxu0 0.0
        %257 = vmatpush1.msra.mxu0 0.0
        %258 = vmatprep.subr.mxu0 0.0
        %259 = vmatpush1.msra.mxu0 0.0
        %260 = vmatprep.subr.mxu0 0.0
        %261 = vmatpush1.msra.mxu0 0.0
        %262 = vmatprep.subr.mxu0 0.0
        %263 = vmatpush1.msra.mxu0 0.0
        %264 = vmatprep.subr.mxu0 0.0
        %265 = vmatpush1.msra.mxu0 0.0
        %266 = vmatprep.subr.mxu0 0.0
        %267 = vmatpush1.msra.mxu0 0.0
        %268 = vmatprep.subr.mxu0 0.0
        %269 = vmatpush1.msra.mxu0 0.0
        %270 = vmatprep.subr.mxu0 0.0
        %271 = vmatpush1.msra.mxu0 0.0
        %272 = vmatprep.subr.mxu0 0.0
        %273 = vmatpush1.msra.mxu0 0.0
        %274 = vmatprep.subr.mxu0 0.0
        %275 = vmatpush1.msra.mxu0 0.0
        %276 = vmatprep.subr.mxu0 0.0
        %277 = vmatpush1.msra.mxu0 0.0
        %278 = vmatprep.subr.mxu0 0.0
        %279 = vmatpush1.msra.mxu0 0.0
        %280 = vmatprep.subr.mxu0 0.0
        %281 = vmatpush1.msra.mxu0 0.0
        %282 = vmatprep.subr.mxu0 0.0
        %283 = vmatpush1.msra.mxu0 0.0
        %284 = vmatprep.subr.mxu0 0.0
        %285 = vmatpush1.msra.mxu0 0.0
        %286 = vmatprep.subr.mxu0 0.0
        %287 = vmatpush1.msra.mxu0 0.0
        %288 = vmatprep.subr.mxu0 0.0
        %289 = vmatpush1.msra.mxu0 0.0
        %290 = vmatprep.subr.mxu0 0.0
        %291 = vmatpush1.msra.mxu0 0.0
        %292 = vmatprep.subr.mxu0 0.0
        %293 = vmatpush1.msra.mxu0 0.0
        %294 = vmatprep.subr.mxu0 0.0
        %295 = vmatpush1.msra.mxu0 0.0
        %296 = vmatprep.subr.mxu0 0.0
        %297 = vmatpush1.msra.mxu0 0.0
        %298 = vmatprep.subr.mxu0 0.0
        %299 = vmatpush1.msra.mxu0 0.0
        %300 = vmatprep.subr.mxu0 0.0
        %301 = vmatpush1.msra.mxu0 0.0
        %302 = vmatprep.subr.mxu0 0.0
        %303 = vmatpush1.msra.mxu0 0.0
        %304 = vmatprep.subr.mxu0 0.0
        %305 = vmatpush1.msra.mxu0 0.0
        %306 = vmatprep.subr.mxu0 0.0
        %307 = vmatpush1.msra.mxu0 0.0
        %308 = vmatprep.subr.mxu0 0.0
        %309 = vmatpush1.msra.mxu0 0.0
        %310 = vmatprep.subr.mxu0 0.0
        %311 = vmatpush1.msra.mxu0 0.0
        %312 = vmatprep.subr.mxu0 0.0
        %313 = vmatpush1.msra.mxu0 0.0
        %314 = vmatprep.subr.mxu0 0.0
        %315 = vmatpush1.msra.mxu0 0.0
        %316 = vmatprep.subr.mxu0 0.0
        %317 = vmatpush1.msra.mxu0 0.0
        %318 = vmatprep.mubr.f32.mxu0 0.0
        %319 = vmatmul.mubr.f32.gmra.mrb[0].mxu0 %v231
        %v320 = vpop.f32.mrb[0].mxu0
        %v321 = vadd.f32 0.0, %v320
        %v322 = vpop.f32.mrb[0].mxu0
        %323 = vmatprep.mubr.f32.mxu0 0.0
        %324 = vmatmul.mubr.f32.gmra.mrb[0].mxu0 %v234
        %v325 = vpop.f32.mrb[0].mxu0
        %v326 = vadd.f32 0.0, %v325
        %v327 = vpop.f32.mrb[0].mxu0
        %328 = vmatprep.mubr.f32.mxu0 0.0
        %329 = vmatmul.mubr.f32.gmra.mrb[0].mxu0 %v237
        %v330 = vpop.f32.mrb[0].mxu0
        %v331 = vadd.f32 0.0, %v330
        %v332 = vpop.f32.mrb[0].mxu0
        %333 = vmatprep.mubr.f32.mxu0 0.0
        %334 = vmatmul.mubr.f32.gmra.mrb[0].mxu0 %v240
        %v335 = vpop.f32.mrb[0].mxu0
        %v336 = vadd.f32 0.0, %v335
        %v337 = vpop.f32.mrb[0].mxu0
        %338 = vmatprep.mubr.f32.mxu0 0.0
        %339 = vmatmul.mubr.f32.gmra.mrb[0].mxu0 %v243
        %v340 = vpop.f32.mrb[0].mxu0
        %v341 = vadd.f32 0.0, %v340
        %v342 = vpop.f32.mrb[0].mxu0
        %343 = vmatprep.mubr.f32.mxu0 0.0
        %344 = vmatmul.mubr.f32.gmra.mrb[0].mxu0 %v246
        %v345 = vpop.f32.mrb[0].mxu0
        %v346 = vadd.f32 0.0, %v345
        %v347 = vpop.f32.mrb[0].mxu0
        %348 = vmatprep.mubr.f32.mxu0 0.0
        %349 = vmatmul.mubr.f32.gmra.mrb[0].mxu0 %v249
        %v350 = vpop.f32.mrb[0].mxu0
        %v351 = vadd.f32 0.0, %v350
        %v352 = vpop.f32.mrb[0].mxu0
        %353 = vmatprep.mubr.f32.mxu0 0.0
        %354 = vmatmul.mubr.f32.gmra.mrb[0].mxu0 %v252
        %v355 = vpop.f32.mrb[0].mxu0
        %v356 = vadd.f32 0.0, %v355
        %v357 = vpop.f32.mrb[0].mxu0
        %358 = vdwg.mxu0
        %v360 = vsel %vm229, %v193, 0
        %v363 = vsel %vm229, %v194, 0
        %v366 = vsel %vm229, %v195, 0
        %v369 = vsel %vm229, %v196, 0
        %v372 = vsel %vm229, %v197, 0
        %v375 = vsel %vm229, %v198, 0
        %v378 = vsel %vm229, %v199, 0
        %v381 = vsel %vm229, %v200, 0
        %383 = vmatprep.subr.mxu0 0.0
        %384 = vmatpush1.msra.mxu0 %v188
        %385 = vmatprep.subr.mxu0 0.0
        %386 = vmatpush1.msra.mxu0 0.0
        %387 = vmatprep.subr.mxu0 0.0
        %388 = vmatpush1.msra.mxu0 0.0
        %389 = vmatprep.subr.mxu0 0.0
        %390 = vmatpush1.msra.mxu0 0.0
        %391 = vmatprep.subr.mxu0 0.0
        %392 = vmatpush1.msra.mxu0 0.0
        %393 = vmatprep.subr.mxu0 0.0
        %394 = vmatpush1.msra.mxu0 0.0
        %395 = vmatprep.subr.mxu0 0.0
        %396 = vmatpush1.msra.mxu0 0.0
        %397 = vmatprep.subr.mxu0 0.0
        %398 = vmatpush1.msra.mxu0 0.0
        %399 = vmatprep.subr.mxu0 0.0
        %400 = vmatpush1.msra.mxu0 0.0
        %401 = vmatprep.subr.mxu0 0.0
        %402 = vmatpush1.msra.mxu0 0.0
        %403 = vmatprep.subr.mxu0 0.0
        %404 = vmatpush1.msra.mxu0 0.0
        %405 = vmatprep.subr.mxu0 0.0
        %406 = vmatpush1.msra.mxu0 0.0
        %407 = vmatprep.subr.mxu0 0.0
        %408 = vmatpush1.msra.mxu0 0.0
        %409 = vmatprep.subr.mxu0 0.0
        %410 = vmatpush1.msra.mxu0 0.0
        %411 = vmatprep.subr.mxu0 0.0
        %412 = vmatpush1.msra.mxu0 0.0
        %413 = vmatprep.subr.mxu0 0.0
        %414 = vmatpush1.msra.mxu0 0.0
        %415 = vmatprep.subr.mxu0 0.0
        %416 = vmatpush1.msra.mxu0 0.0
        %417 = vmatprep.subr.mxu0 0.0
        %418 = vmatpush1.msra.mxu0 0.0
        %419 = vmatprep.subr.mxu0 0.0
        %420 = vmatpush1.msra.mxu0 0.0
        %421 = vmatprep.subr.mxu0 0.0
        %422 = vmatpush1.msra.mxu0 0.0
        %423 = vmatprep.subr.mxu0 0.0
        %424 = vmatpush1.msra.mxu0 0.0
        %425 = vmatprep.subr.mxu0 0.0
        %426 = vmatpush1.msra.mxu0 0.0
        %427 = vmatprep.subr.mxu0 0.0
        %428 = vmatpush1.msra.mxu0 0.0
        %429 = vmatprep.subr.mxu0 0.0
        %430 = vmatpush1.msra.mxu0 0.0
        %431 = vmatprep.subr.mxu0 0.0
        %432 = vmatpush1.msra.mxu0 0.0
        %433 = vmatprep.subr.mxu0 0.0
        %434 = vmatpush1.msra.mxu0 0.0
        %435 = vmatprep.subr.mxu0 0.0
        %436 = vmatpush1.msra.mxu0 0.0
        %437 = vmatprep.subr.mxu0 0.0
        %438 = vmatpush1.msra.mxu0 0.0
        %439 = vmatprep.subr.mxu0 0.0
        %440 = vmatpush1.msra.mxu0 0.0
        %441 = vmatprep.subr.mxu0 0.0
        %442 = vmatpush1.msra.mxu0 0.0
        %443 = vmatprep.subr.mxu0 0.0
        %444 = vmatpush1.msra.mxu0 0.0
        %445 = vmatprep.subr.mxu0 0.0
        %446 = vmatpush1.msra.mxu0 0.0
        %447 = vmatprep.mubr.f32.mxu0 0.0
        %448 = vmatmul.mubr.f32.gmra.mrb[0].mxu0 %v360
        %v449 = vpop.f32.mrb[0].mxu0
        %v450 = vadd.f32 %v321, %v449
        %v451 = vpop.f32.mrb[0].mxu0
        %452 = vmatprep.mubr.f32.mxu0 0.0
        %453 = vmatmul.mubr.f32.gmra.mrb[0].mxu0 %v363
        %v454 = vpop.f32.mrb[0].mxu0
        %v455 = vadd.f32 %v326, %v454
        %v456 = vpop.f32.mrb[0].mxu0
        %457 = vmatprep.mubr.f32.mxu0 0.0
        %458 = vmatmul.mubr.f32.gmra.mrb[0].mxu0 %v366
        %v459 = vpop.f32.mrb[0].mxu0
        %v460 = vadd.f32 %v331, %v459
        %v461 = vpop.f32.mrb[0].mxu0
        %462 = vmatprep.mubr.f32.mxu0 0.0
        %463 = vmatmul.mubr.f32.gmra.mrb[0].mxu0 %v369
        %v464 = vpop.f32.mrb[0].mxu0
        %v465 = vadd.f32 %v336, %v464
        %v466 = vpop.f32.mrb[0].mxu0
        %467 = vmatprep.mubr.f32.mxu0 0.0
        %468 = vmatmul.mubr.f32.gmra.mrb[0].mxu0 %v372
        %v469 = vpop.f32.mrb[0].mxu0
        %v470 = vadd.f32 %v341, %v469
        %v471 = vpop.f32.mrb[0].mxu0
        %472 = vmatprep.mubr.f32.mxu0 0.0
        %473 = vmatmul.mubr.f32.gmra.mrb[0].mxu0 %v375
        %v474 = vpop.f32.mrb[0].mxu0
        %v475 = vadd.f32 %v346, %v474
        %v476 = vpop.f32.mrb[0].mxu0
        %477 = vmatprep.mubr.f32.mxu0 0.0
        %478 = vmatmul.mubr.f32.gmra.mrb[0].mxu0 %v378
        %v479 = vpop.f32.mrb[0].mxu0
        %v480 = vadd.f32 %v351, %v479
        %v481 = vpop.f32.mrb[0].mxu0
        %482 = vmatprep.mubr.f32.mxu0 0.0
        %483 = vmatmul.mubr.f32.gmra.mrb[0].mxu0 %v381
        %v484 = vpop.f32.mrb[0].mxu0
        %v485 = vadd.f32 %v356, %v484
        %v486 = vpop.f32.mrb[0].mxu0
        %487 = vdwg.mxu0
        %v489 = vsel %vm229, %v221, 0
        %v492 = vsel %vm229, %v222, 0
        %v495 = vsel %vm229, %v223, 0
        %v498 = vsel %vm229, %v224, 0
        %v501 = vsel %vm229, %v225, 0
        %v504 = vsel %vm229, %v226, 0
        %v507 = vsel %vm229, %v227, 0
        %v510 = vsel %vm229, %v228, 0
        %512 = vmatprep.subr.mxu0 0.0
        %513 = vmatpush1.msra.mxu0 %v188
        %514 = vmatprep.subr.mxu0 0.0
        %515 = vmatpush1.msra.mxu0 0.0
        %516 = vmatprep.subr.mxu0 0.0
        %517 = vmatpush1.msra.mxu0 0.0
        %518 = vmatprep.subr.mxu0 0.0
        %519 = vmatpush1.msra.mxu0 0.0
        %520 = vmatprep.subr.mxu0 0.0
        %521 = vmatpush1.msra.mxu0 0.0
        %522 = vmatprep.subr.mxu0 0.0
        %523 = vmatpush1.msra.mxu0 0.0
        %524 = vmatprep.subr.mxu0 0.0
        %525 = vmatpush1.msra.mxu0 0.0
        %526 = vmatprep.subr.mxu0 0.0
        %527 = vmatpush1.msra.mxu0 0.0
        %528 = vmatprep.subr.mxu0 0.0
        %529 = vmatpush1.msra.mxu0 0.0
        %530 = vmatprep.subr.mxu0 0.0
        %531 = vmatpush1.msra.mxu0 0.0
        %532 = vmatprep.subr.mxu0 0.0
        %533 = vmatpush1.msra.mxu0 0.0
        %534 = vmatprep.subr.mxu0 0.0
        %535 = vmatpush1.msra.mxu0 0.0
        %536 = vmatprep.subr.mxu0 0.0
        %537 = vmatpush1.msra.mxu0 0.0
        %538 = vmatprep.subr.mxu0 0.0
        %539 = vmatpush1.msra.mxu0 0.0
        %540 = vmatprep.subr.mxu0 0.0
        %541 = vmatpush1.msra.mxu0 0.0
        %542 = vmatprep.subr.mxu0 0.0
        %543 = vmatpush1.msra.mxu0 0.0
        %544 = vmatprep.subr.mxu0 0.0
        %545 = vmatpush1.msra.mxu0 0.0
        %546 = vmatprep.subr.mxu0 0.0
        %547 = vmatpush1.msra.mxu0 0.0
        %548 = vmatprep.subr.mxu0 0.0
        %549 = vmatpush1.msra.mxu0 0.0
        %550 = vmatprep.subr.mxu0 0.0
        %551 = vmatpush1.msra.mxu0 0.0
        %552 = vmatprep.subr.mxu0 0.0
        %553 = vmatpush1.msra.mxu0 0.0
        %554 = vmatprep.subr.mxu0 0.0
        %555 = vmatpush1.msra.mxu0 0.0
        %556 = vmatprep.subr.mxu0 0.0
        %557 = vmatpush1.msra.mxu0 0.0
        %558 = vmatprep.subr.mxu0 0.0
        %559 = vmatpush1.msra.mxu0 0.0
        %560 = vmatprep.subr.mxu0 0.0
        %561 = vmatpush1.msra.mxu0 0.0
        %562 = vmatprep.subr.mxu0 0.0
        %563 = vmatpush1.msra.mxu0 0.0
        %564 = vmatprep.subr.mxu0 0.0
        %565 = vmatpush1.msra.mxu0 0.0
        %566 = vmatprep.subr.mxu0 0.0
        %567 = vmatpush1.msra.mxu0 0.0
        %568 = vmatprep.subr.mxu0 0.0
        %569 = vmatpush1.msra.mxu0 0.0
        %570 = vmatprep.subr.mxu0 0.0
        %571 = vmatpush1.msra.mxu0 0.0
        %572 = vmatprep.subr.mxu0 0.0
        %573 = vmatpush1.msra.mxu0 0.0
        %574 = vmatprep.subr.mxu0 0.0
        %575 = vmatpush1.msra.mxu0 0.0
        %576 = vmatprep.mubr.f32.mxu0 0.0
        %577 = vmatmul.mubr.f32.gmra.mrb[0].mxu0 %v489
        %v578 = vpop.f32.mrb[0].mxu0
        %v579 = vadd.f32 0.0, %v578
        %v580 = vpop.f32.mrb[0].mxu0
        %581 = vmatprep.mubr.f32.mxu0 0.0
        %582 = vmatmul.mubr.f32.gmra.mrb[0].mxu0 %v492
        %v583 = vpop.f32.mrb[0].mxu0
        %v584 = vadd.f32 0.0, %v583
        %v585 = vpop.f32.mrb[0].mxu0
        %586 = vmatprep.mubr.f32.mxu0 0.0
        %587 = vmatmul.mubr.f32.gmra.mrb[0].mxu0 %v495
        %v588 = vpop.f32.mrb[0].mxu0
        %v589 = vadd.f32 0.0, %v588
        %v590 = vpop.f32.mrb[0].mxu0
        %591 = vmatprep.mubr.f32.mxu0 0.0
        %592 = vmatmul.mubr.f32.gmra.mrb[0].mxu0 %v498
        %v593 = vpop.f32.mrb[0].mxu0
        %v594 = vadd.f32 0.0, %v593
        %v595 = vpop.f32.mrb[0].mxu0
        %596 = vmatprep.mubr.f32.mxu0 0.0
        %597 = vmatmul.mubr.f32.gmra.mrb[0].mxu0 %v501
        %v598 = vpop.f32.mrb[0].mxu0
        %v599 = vadd.f32 0.0, %v598
        %v600 = vpop.f32.mrb[0].mxu0
        %601 = vmatprep.mubr.f32.mxu0 0.0
        %602 = vmatmul.mubr.f32.gmra.mrb[0].mxu0 %v504
        %v603 = vpop.f32.mrb[0].mxu0
        %v604 = vadd.f32 0.0, %v603
        %v605 = vpop.f32.mrb[0].mxu0
        %606 = vmatprep.mubr.f32.mxu0 0.0
        %607 = vmatmul.mubr.f32.gmra.mrb[0].mxu0 %v507
        %v608 = vpop.f32.mrb[0].mxu0
        %v609 = vadd.f32 0.0, %v608
        %v610 = vpop.f32.mrb[0].mxu0
        %611 = vmatprep.mubr.f32.mxu0 0.0
        %612 = vmatmul.mubr.f32.gmra.mrb[0].mxu0 %v510
        %v613 = vpop.f32.mrb[0].mxu0
        %v614 = vadd.f32 0.0, %v613
        %v615 = vpop.f32.mrb[0].mxu0
        %616 = vdwg.mxu0
        %v617 = vadd.f32 %v450, %v579
        %v618 = vadd.f32 %v455, %v584
        %v619 = vadd.f32 %v460, %v589
        %v620 = vadd.f32 %v465, %v594
        %v621 = vadd.f32 %v470, %v599
        %v622 = vadd.f32 %v475, %v604
        %v623 = vadd.f32 %v480, %v609
        %v624 = vadd.f32 %v485, %v614
        %v625 = vld [vmem:[%s2] sm:$0x1]
        %v626 = vrcp.pop %v617
        %v627 = vrcp.pop %v618
        %v628 = vrcp.pop %v619
        %v629 = vrcp.pop %v620
        %v630 = vrcp.pop %v621
        %v631 = vrcp.pop %v622
        %v632 = vrcp.pop %v623
        %v633 = vrcp.pop %v624
        %v634 = vmul.f32 %v617, %v626
        %v635 = vmul.f32 %v618, %v627
        %v636 = vmul.f32 %v619, %v628
        %v637 = vmul.f32 %v620, %v629
        %v638 = vmul.f32 %v621, %v630
        %v639 = vmul.f32 %v622, %v631
        %v640 = vmul.f32 %v623, %v632
        %v641 = vmul.f32 %v624, %v633
        %v642 = vsub.f32 2.0, %v634
        %v643 = vsub.f32 2.0, %v635
        %v644 = vsub.f32 2.0, %v636
        %v645 = vsub.f32 2.0, %v637
        %v646 = vsub.f32 2.0, %v638
        %v647 = vsub.f32 2.0, %v639
        %v648 = vsub.f32 2.0, %v640
        %v649 = vsub.f32 2.0, %v641
        %v650 = vmul.f32 %v626, %v642
        %v651 = vmul.f32 %v627, %v643
        %v652 = vmul.f32 %v628, %v644
        %v653 = vmul.f32 %v629, %v645
        %v654 = vmul.f32 %v630, %v646
        %v655 = vmul.f32 %v631, %v647
        %v656 = vmul.f32 %v632, %v648
        %v657 = vmul.f32 %v633, %v649
        %v658 = vmul.f32 %v617, %v617
        %v659 = vmul.f32 %v618, %v618
        %v660 = vmul.f32 %v619, %v619
        %v661 = vmul.f32 %v620, %v620
        %v662 = vmul.f32 %v621, %v621
        %v663 = vmul.f32 %v622, %v622
        %v664 = vmul.f32 %v623, %v623
        %v665 = vmul.f32 %v624, %v624
        %v666 = vmul.f32 %v658, %v658
        %v667 = vmul.f32 %v659, %v659
        %v668 = vmul.f32 %v660, %v660
        %v669 = vmul.f32 %v661, %v661
        %v670 = vmul.f32 %v662, %v662
        %v671 = vmul.f32 %v663, %v663
        %v672 = vmul.f32 %v664, %v664
        %v673 = vmul.f32 %v665, %v665
        %v674 = vmul.f32 %v617, %v666
        %v675 = vmul.f32 %v618, %v667
        %v676 = vmul.f32 %v619, %v668
        %v677 = vmul.f32 %v620, %v669
        %v678 = vmul.f32 %v621, %v670
        %v679 = vmul.f32 %v622, %v671
        %v680 = vmul.f32 %v623, %v672
        %v681 = vmul.f32 %v624, %v673
        %v682 = vmul.f32 %v617, -15.0
        %v683 = vmul.f32 %v618, -15.0
        %v684 = vmul.f32 %v619, -15.0
        %v685 = vmul.f32 %v620, -15.0
        %v686 = vmul.f32 %v621, -15.0
        %v687 = vmul.f32 %v622, -15.0
        %v688 = vmul.f32 %v623, -15.0
        %v689 = vmul.f32 %v624, -15.0
        %v690 = vadd.f32 %v682, 35.0
        %v691 = vadd.f32 %v683, 35.0
        %v692 = vadd.f32 %v684, 35.0
        %v693 = vadd.f32 %v685, 35.0
        %v694 = vadd.f32 %v686, 35.0
        %v695 = vadd.f32 %v687, 35.0
        %v696 = vadd.f32 %v688, 35.0
        %v697 = vadd.f32 %v689, 35.0
        %v698 = vmul.f32 %v617, %v690
        %v699 = vmul.f32 %v618, %v691
        %v700 = vmul.f32 %v619, %v692
        %v701 = vmul.f32 %v620, %v693
        %v702 = vmul.f32 %v621, %v694
        %v703 = vmul.f32 %v622, %v695
        %v704 = vmul.f32 %v623, %v696
        %v705 = vmul.f32 %v624, %v697
        %v706 = vadd.f32 %v698, -21.0
        %v707 = vadd.f32 %v699, -21.0
        %v708 = vadd.f32 %v700, -21.0
        %v709 = vadd.f32 %v701, -21.0
        %v710 = vadd.f32 %v702, -21.0
        %v711 = vadd.f32 %v703, -21.0
        %v712 = vadd.f32 %v704, -21.0
        %v713 = vadd.f32 %v705, -21.0
        %v714 = vmul.f32 %v674, %v706
        %v715 = vmul.f32 %v675, %v707
        %v716 = vmul.f32 %v676, %v708
        %v717 = vmul.f32 %v677, %v709
        %v718 = vmul.f32 %v678, %v710
        %v719 = vmul.f32 %v679, %v711
        %v720 = vmul.f32 %v680, %v712
        %v721 = vmul.f32 %v681, %v713
        %v722 = vadd.f32 %v650, %v714
        %v723 = vadd.f32 %v651, %v715
        %v724 = vadd.f32 %v652, %v716
        %v725 = vadd.f32 %v653, %v717
        %v726 = vadd.f32 %v654, %v718
        %v727 = vadd.f32 %v655, %v719
        %v728 = vadd.f32 %v656, %v720
        %v729 = vadd.f32 %v657, %v721
        %vm730 = vcmp.lt.f32.partialorder %v617, 1.0
        %vm731 = vcmp.lt.f32.partialorder %v618, 1.0
        %vm732 = vcmp.lt.f32.partialorder %v619, 1.0
        %vm733 = vcmp.lt.f32.partialorder %v620, 1.0
        %vm734 = vcmp.lt.f32.partialorder %v621, 1.0
        %vm735 = vcmp.lt.f32.partialorder %v622, 1.0
        %vm736 = vcmp.lt.f32.partialorder %v623, 1.0
        %vm737 = vcmp.lt.f32.partialorder %v624, 1.0
        %v738 = vsel %vm730, %v722, 0.0
        %v739 = vsel %vm731, %v723, 0.0
        %v740 = vsel %vm732, %v724, 0.0
        %v741 = vsel %vm733, %v725, 0.0
        %v742 = vsel %vm734, %v726, 0.0
        %v743 = vsel %vm735, %v727, 0.0
        %v744 = vsel %vm736, %v728, 0.0
        %v745 = vsel %vm737, %v729, 0.0
        %v747 = vlaneseq
        %v748 = vshrl.u32 %v747, 7
        %v749 = vsub.s32 0, %v748
        %v750 = vrot.slane %v625, %v749
        %v752 = vmul.f32 %v750, %v617
        %v753 = vmul.f32 %v750, %v618
        %v754 = vmul.f32 %v750, %v619
        %v755 = vmul.f32 %v750, %v620
        %v756 = vmul.f32 %v750, %v621
        %v757 = vmul.f32 %v750, %v622
        %v758 = vmul.f32 %v750, %v623
        %v759 = vmul.f32 %v750, %v624
        %v760 = vand.u32 2147483647, %v752
        %vm761 = vcmp.le.f32.partialorder %v760, 0.7853982
        %vm762 = vcmp.lt.s32.totalorder %v752, 0
        %v763 = vand.u32 %v752, 2139095040
        %v764 = vshrl.u32 %v763, 23
        %v765 = vsub.s32 %v764, 127
        %v766 = vand.u32 2147483647, %v752
        %v767 = vand.u32 %v766, 8388607
        %v768 = vor.u32 %v767, 8388608
        %v769 = vsub.s32 0, %v768
        %v770 = vadd.s32 %v765, 1
        %vm771 = vcmp.gt.s32.totalorder %v770, 0
        %v772 = vsel %vm771, %v770, 0
        %v773 = vshrl.u32 %v772, 5
        %v774 = vand.u32 %v772, 31
        %v775 = vsub.s32 32, %v774
        %v776 = vshrl.u32 683565275, %v775
        %v777 = vshll.u32 683565275, %v774
        %v778 = vshrl.u32 2475754826, %v775
        %v779 = vor.u32 %v777, %v778
        %v780 = vshll.u32 2475754826, %v774
        %v781 = vshrl.u32 2131351028, %v775
        %v782 = vor.u32 %v780, %v781
        %v783 = vshll.u32 2131351028, %v774
        %v784 = vshrl.u32 2102212464, %v775
        %v785 = vor.u32 %v783, %v784
        %v786 = vshll.u32 2102212464, %v774
        %v787 = vshrl.u32 920167782, %v775
        %v788 = vor.u32 %v786, %v787
        %v789 = vshll.u32 920167782, %v774
        %v790 = vshrl.u32 1326507024, %v775
        %v791 = vor.u32 %v789, %v790
        %vm792 = vcmp.lt.s32.totalorder %v773, 1
        %vm793 = vcmp.lt.s32.totalorder %v773, 2
        %vm794 = vcmp.lt.s32.totalorder %v773, 3
        %vm795 = vcmp.lt.s32.totalorder %v773, 4
        %v796 = vsel %vm792, %v776, %v779
        %v797 = vsel %vm795, %v785, 2102212464
        %v798 = vsel %vm794, %v782, %v797
        %v799 = vsel %vm793, %v796, %v798
        %v800 = vsel %vm792, %v779, %v782
        %v801 = vsel %vm795, %v788, 920167782
        %v802 = vsel %vm794, %v785, %v801
        %v803 = vsel %vm793, %v800, %v802
        %v804 = vsel %vm792, %v782, %v785
        %v805 = vsel %vm795, %v791, 1326507024
        %v806 = vsel %vm794, %v788, %v805
        %v807 = vsel %vm793, %v804, %v806
        %v808 = vshll.u32 %v768, 8
        %v809 = vmul.u32.u64.compose %v808, %v807
        %v810 = vextract.low.u32 %v809
        %v811 = vextract.high.u32 %v809
        %v812 = vmul.u32.u64.compose %v808, %v803
        %v813 = vextract.low.u32 %v812
        %v814 = vextract.high.u32 %v812
        %v815 = vmul.u32 %v808, %v799
        %v816 = vadd.s32 %v811, %v813
        %vm817 = vc.u32 %v811, %v813
        %v818 = vadd.s32 %v814, 1
        %v819 = vsel %vm817, %v818, %v814
        %v820 = vadd.s32 %v815, %v819
        %v821 = vadd.s32 %v820, 536870912
        %v822 = vshrl.u32 %v821, 30
        %v823 = vshll.u32 %v822, 30
        %v824 = vsub.s32 %v820, %v823
        %vm825 = vcmp.lt.s32.totalorder %v824, 0
        %v826 = vsub.s32 0, %v824
        %v827 = vsel %vm825, %v826, %v824
        %v828 = vclz %v827
        %v829 = vsub.s32 %v828, 2
        %vm830 = vcmp.gt.s32.totalorder 0, %v829
        %v831 = vsel %vm830, 0, %v829
        %v832 = vsub.s32 32, %v831
        %v833 = vshll.u32 %v824, %v831
        %v834 = vshrl.u32 %v816, %v832
        %v835 = vor.u32 %v833, %v834
        %v836 = vsub.s32 4294967266, %v831
        %v837 = vadd.s32 %v836, 127
        %v838 = vshll.u32 %v837, 23
        %v839 = vor.u32 4788187, %v838
        %v840 = vand.u32 2147483647, %v839
        %v842 = vcvt.s32.f32 %v835
        %v843 = vmul.f32 %v842, %v840
        %v844 = vxor.u32 %v843, 2147483648
        %v845 = vsel %vm762, %v844, %v843
        %v846 = vsub.s32 4, %v822
        %v847 = vsel %vm762, %v846, %v822
        %v848 = vsel %vm761, %v752, %v845
        %v849 = vsel %vm761, 0, %v847
        %v850 = vcosq.f32.pop %v848
        %v851 = vsinq.f32.pop %v848
        %vm852 = vweird.f32 %v752
        %v853 = vadd.s32 %v849, 3
        %v854 = vand.u32 %v853, 3
        %vm855 = vcmp.lt.s32.totalorder %v854, 2
        %vm856 = vcmp.eq.s32.totalorder %v854, 0
        %v857 = vxor.u32 %v851, 2147483648
        %v858 = vsel %vm856, %v850, %v857
        %vm859 = vcmp.eq.s32.totalorder %v854, 2
        %v860 = vxor.u32 %v850, 2147483648
        %v861 = vsel %vm859, %v860, %v851
        %v862 = vsel %vm855, %v858, %v861
        %v863 = vsel %vm852, nan, %v862
        %v864 = vand.u32 2147483647, %v753
        %vm865 = vcmp.le.f32.partialorder %v864, 0.7853982
        %vm866 = vcmp.lt.s32.totalorder %v753, 0
        %v867 = vand.u32 %v753, 2139095040
        %v868 = vshrl.u32 %v867, 23
        %v869 = vsub.s32 %v868, 127
        %v870 = vand.u32 2147483647, %v753
        %v871 = vand.u32 %v870, 8388607
        %v872 = vor.u32 %v871, 8388608
        %v873 = vsub.s32 0, %v872
        %v874 = vadd.s32 %v869, 1
        %vm875 = vcmp.gt.s32.totalorder %v874, 0
        %v876 = vsel %vm875, %v874, 0
        %v877 = vshrl.u32 %v876, 5
        %v878 = vand.u32 %v876, 31
        %v879 = vsub.s32 32, %v878
        %v880 = vshrl.u32 683565275, %v879
        %v881 = vshll.u32 683565275, %v878
        %v882 = vshrl.u32 2475754826, %v879
        %v883 = vor.u32 %v881, %v882
        %v884 = vshll.u32 2475754826, %v878
        %v885 = vshrl.u32 2131351028, %v879
        %v886 = vor.u32 %v884, %v885
        %v887 = vshll.u32 2131351028, %v878
        %v888 = vshrl.u32 2102212464, %v879
        %v889 = vor.u32 %v887, %v888
        %v890 = vshll.u32 2102212464, %v878
        %v891 = vshrl.u32 920167782, %v879
        %v892 = vor.u32 %v890, %v891
        %v893 = vshll.u32 920167782, %v878
        %v894 = vshrl.u32 1326507024, %v879
        %v895 = vor.u32 %v893, %v894
        %vm896 = vcmp.lt.s32.totalorder %v877, 1
        %vm897 = vcmp.lt.s32.totalorder %v877, 2
        %vm898 = vcmp.lt.s32.totalorder %v877, 3
        %vm899 = vcmp.lt.s32.totalorder %v877, 4
        %v900 = vsel %vm896, %v880, %v883
        %v901 = vsel %vm899, %v889, 2102212464
        %v902 = vsel %vm898, %v886, %v901
        %v903 = vsel %vm897, %v900, %v902
        %v904 = vsel %vm896, %v883, %v886
        %v905 = vsel %vm899, %v892, 920167782
        %v906 = vsel %vm898, %v889, %v905
        %v907 = vsel %vm897, %v904, %v906
        %v908 = vsel %vm896, %v886, %v889
        %v909 = vsel %vm899, %v895, 1326507024
        %v910 = vsel %vm898, %v892, %v909
        %v911 = vsel %vm897, %v908, %v910
        %v912 = vshll.u32 %v872, 8
        %v913 = vmul.u32.u64.compose %v912, %v911
        %v914 = vextract.low.u32 %v913
        %v915 = vextract.high.u32 %v913
        %v916 = vmul.u32.u64.compose %v912, %v907
        %v917 = vextract.low.u32 %v916
        %v918 = vextract.high.u32 %v916
        %v919 = vmul.u32 %v912, %v903
        %v920 = vadd.s32 %v915, %v917
        %vm921 = vc.u32 %v915, %v917
        %v922 = vadd.s32 %v918, 1
        %v923 = vsel %vm921, %v922, %v918
        %v924 = vadd.s32 %v919, %v923
        %v925 = vadd.s32 %v924, 536870912
        %v926 = vshrl.u32 %v925, 30
        %v927 = vshll.u32 %v926, 30
        %v928 = vsub.s32 %v924, %v927
        %vm929 = vcmp.lt.s32.totalorder %v928, 0
        %v930 = vsub.s32 0, %v928
        %v931 = vsel %vm929, %v930, %v928
        %v932 = vclz %v931
        %v933 = vsub.s32 %v932, 2
        %vm934 = vcmp.gt.s32.totalorder 0, %v933
        %v935 = vsel %vm934, 0, %v933
        %v936 = vsub.s32 32, %v935
        %v937 = vshll.u32 %v928, %v935
        %v938 = vshrl.u32 %v920, %v936
        %v939 = vor.u32 %v937, %v938
        %v940 = vsub.s32 4294967266, %v935
        %v941 = vadd.s32 %v940, 127
        %v942 = vshll.u32 %v941, 23
        %v943 = vor.u32 4788187, %v942
        %v944 = vand.u32 2147483647, %v943
        %v946 = vcvt.s32.f32 %v939
        %v947 = vmul.f32 %v946, %v944
        %v948 = vxor.u32 %v947, 2147483648
        %v949 = vsel %vm866, %v948, %v947
        %v950 = vsub.s32 4, %v926
        %v951 = vsel %vm866, %v950, %v926
        %v952 = vsel %vm865, %v753, %v949
        %v953 = vsel %vm865, 0, %v951
        %v954 = vcosq.f32.pop %v952
        %v955 = vsinq.f32.pop %v952
        %vm956 = vweird.f32 %v753
        %v957 = vadd.s32 %v953, 3
        %v958 = vand.u32 %v957, 3
        %vm959 = vcmp.lt.s32.totalorder %v958, 2
        %vm960 = vcmp.eq.s32.totalorder %v958, 0
        %v961 = vxor.u32 %v955, 2147483648
        %v962 = vsel %vm960, %v954, %v961
        %vm963 = vcmp.eq.s32.totalorder %v958, 2
        %v964 = vxor.u32 %v954, 2147483648
        %v965 = vsel %vm963, %v964, %v955
        %v966 = vsel %vm959, %v962, %v965
        %v967 = vsel %vm956, nan, %v966
        %v968 = vand.u32 2147483647, %v754
        %vm969 = vcmp.le.f32.partialorder %v968, 0.7853982
        %vm970 = vcmp.lt.s32.totalorder %v754, 0
        %v971 = vand.u32 %v754, 2139095040
        %v972 = vshrl.u32 %v971, 23
        %v973 = vsub.s32 %v972, 127
        %v974 = vand.u32 2147483647, %v754
        %v975 = vand.u32 %v974, 8388607
        %v976 = vor.u32 %v975, 8388608
        %v977 = vsub.s32 0, %v976
        %v978 = vadd.s32 %v973, 1
        %vm979 = vcmp.gt.s32.totalorder %v978, 0
        %v980 = vsel %vm979, %v978, 0
        %v981 = vshrl.u32 %v980, 5
        %v982 = vand.u32 %v980, 31
        %v983 = vsub.s32 32, %v982
        %v984 = vshrl.u32 683565275, %v983
        %v985 = vshll.u32 683565275, %v982
        %v986 = vshrl.u32 2475754826, %v983
        %v987 = vor.u32 %v985, %v986
        %v988 = vshll.u32 2475754826, %v982
        %v989 = vshrl.u32 2131351028, %v983
        %v990 = vor.u32 %v988, %v989
        %v991 = vshll.u32 2131351028, %v982
        %v992 = vshrl.u32 2102212464, %v983
        %v993 = vor.u32 %v991, %v992
        %v994 = vshll.u32 2102212464, %v982
        %v995 = vshrl.u32 920167782, %v983
        %v996 = vor.u32 %v994, %v995
        %v997 = vshll.u32 920167782, %v982
        %v998 = vshrl.u32 1326507024, %v983
        %v999 = vor.u32 %v997, %v998
        %vm1000 = vcmp.lt.s32.totalorder %v981, 1
        %vm1001 = vcmp.lt.s32.totalorder %v981, 2
        %vm1002 = vcmp.lt.s32.totalorder %v981, 3
        %vm1003 = vcmp.lt.s32.totalorder %v981, 4
        %v1004 = vsel %vm1000, %v984, %v987
        %v1005 = vsel %vm1003, %v993, 2102212464
        %v1006 = vsel %vm1002, %v990, %v1005
        %v1007 = vsel %vm1001, %v1004, %v1006
        %v1008 = vsel %vm1000, %v987, %v990
        %v1009 = vsel %vm1003, %v996, 920167782
        %v1010 = vsel %vm1002, %v993, %v1009
        %v1011 = vsel %vm1001, %v1008, %v1010
        %v1012 = vsel %vm1000, %v990, %v993
        %v1013 = vsel %vm1003, %v999, 1326507024
        %v1014 = vsel %vm1002, %v996, %v1013
        %v1015 = vsel %vm1001, %v1012, %v1014
        %v1016 = vshll.u32 %v976, 8
        %v1017 = vmul.u32.u64.compose %v1016, %v1015
        %v1018 = vextract.low.u32 %v1017
        %v1019 = vextract.high.u32 %v1017
        %v1020 = vmul.u32.u64.compose %v1016, %v1011
        %v1021 = vextract.low.u32 %v1020
        %v1022 = vextract.high.u32 %v1020
        %v1023 = vmul.u32 %v1016, %v1007
        %v1024 = vadd.s32 %v1019, %v1021
        %vm1025 = vc.u32 %v1019, %v1021
        %v1026 = vadd.s32 %v1022, 1
        %v1027 = vsel %vm1025, %v1026, %v1022
        %v1028 = vadd.s32 %v1023, %v1027
        %v1029 = vadd.s32 %v1028, 536870912
        %v1030 = vshrl.u32 %v1029, 30
        %v1031 = vshll.u32 %v1030, 30
        %v1032 = vsub.s32 %v1028, %v1031
        %vm1033 = vcmp.lt.s32.totalorder %v1032, 0
        %v1034 = vsub.s32 0, %v1032
        %v1035 = vsel %vm1033, %v1034, %v1032
        %v1036 = vclz %v1035
        %v1037 = vsub.s32 %v1036, 2
        %vm1038 = vcmp.gt.s32.totalorder 0, %v1037
        %v1039 = vsel %vm1038, 0, %v1037
        %v1040 = vsub.s32 32, %v1039
        %v1041 = vshll.u32 %v1032, %v1039
        %v1042 = vshrl.u32 %v1024, %v1040
        %v1043 = vor.u32 %v1041, %v1042
        %v1044 = vsub.s32 4294967266, %v1039
        %v1045 = vadd.s32 %v1044, 127
        %v1046 = vshll.u32 %v1045, 23
        %v1047 = vor.u32 4788187, %v1046
        %v1048 = vand.u32 2147483647, %v1047
        %v1050 = vcvt.s32.f32 %v1043
        %v1051 = vmul.f32 %v1050, %v1048
        %v1052 = vxor.u32 %v1051, 2147483648
        %v1053 = vsel %vm970, %v1052, %v1051
        %v1054 = vsub.s32 4, %v1030
        %v1055 = vsel %vm970, %v1054, %v1030
        %v1056 = vsel %vm969, %v754, %v1053
        %v1057 = vsel %vm969, 0, %v1055
        %v1058 = vcosq.f32.pop %v1056
        %v1059 = vsinq.f32.pop %v1056
        %vm1060 = vweird.f32 %v754
        %v1061 = vadd.s32 %v1057, 3
        %v1062 = vand.u32 %v1061, 3
        %vm1063 = vcmp.lt.s32.totalorder %v1062, 2
        %vm1064 = vcmp.eq.s32.totalorder %v1062, 0
        %v1065 = vxor.u32 %v1059, 2147483648
        %v1066 = vsel %vm1064, %v1058, %v1065
        %vm1067 = vcmp.eq.s32.totalorder %v1062, 2
        %v1068 = vxor.u32 %v1058, 2147483648
        %v1069 = vsel %vm1067, %v1068, %v1059
        %v1070 = vsel %vm1063, %v1066, %v1069
        %v1071 = vsel %vm1060, nan, %v1070
        %v1072 = vand.u32 2147483647, %v755
        %vm1073 = vcmp.le.f32.partialorder %v1072, 0.7853982
        %vm1074 = vcmp.lt.s32.totalorder %v755, 0
        %v1075 = vand.u32 %v755, 2139095040
        %v1076 = vshrl.u32 %v1075, 23
        %v1077 = vsub.s32 %v1076, 127
        %v1078 = vand.u32 2147483647, %v755
        %v1079 = vand.u32 %v1078, 8388607
        %v1080 = vor.u32 %v1079, 8388608
        %v1081 = vsub.s32 0, %v1080
        %v1082 = vadd.s32 %v1077, 1
        %vm1083 = vcmp.gt.s32.totalorder %v1082, 0
        %v1084 = vsel %vm1083, %v1082, 0
        %v1085 = vshrl.u32 %v1084, 5
        %v1086 = vand.u32 %v1084, 31
        %v1087 = vsub.s32 32, %v1086
        %v1088 = vshrl.u32 683565275, %v1087
        %v1089 = vshll.u32 683565275, %v1086
        %v1090 = vshrl.u32 2475754826, %v1087
        %v1091 = vor.u32 %v1089, %v1090
        %v1092 = vshll.u32 2475754826, %v1086
        %v1093 = vshrl.u32 2131351028, %v1087
        %v1094 = vor.u32 %v1092, %v1093
        %v1095 = vshll.u32 2131351028, %v1086
        %v1096 = vshrl.u32 2102212464, %v1087
        %v1097 = vor.u32 %v1095, %v1096
        %v1098 = vshll.u32 2102212464, %v1086
        %v1099 = vshrl.u32 920167782, %v1087
        %v1100 = vor.u32 %v1098, %v1099
        %v1101 = vshll.u32 920167782, %v1086
        %v1102 = vshrl.u32 1326507024, %v1087
        %v1103 = vor.u32 %v1101, %v1102
        %vm1104 = vcmp.lt.s32.totalorder %v1085, 1
        %vm1105 = vcmp.lt.s32.totalorder %v1085, 2
        %vm1106 = vcmp.lt.s32.totalorder %v1085, 3
        %vm1107 = vcmp.lt.s32.totalorder %v1085, 4
        %v1108 = vsel %vm1104, %v1088, %v1091
        %v1109 = vsel %vm1107, %v1097, 2102212464
        %v1110 = vsel %vm1106, %v1094, %v1109
        %v1111 = vsel %vm1105, %v1108, %v1110
        %v1112 = vsel %vm1104, %v1091, %v1094
        %v1113 = vsel %vm1107, %v1100, 920167782
        %v1114 = vsel %vm1106, %v1097, %v1113
        %v1115 = vsel %vm1105, %v1112, %v1114
        %v1116 = vsel %vm1104, %v1094, %v1097
        %v1117 = vsel %vm1107, %v1103, 1326507024
        %v1118 = vsel %vm1106, %v1100, %v1117
        %v1119 = vsel %vm1105, %v1116, %v1118
        %v1120 = vshll.u32 %v1080, 8
        %v1121 = vmul.u32.u64.compose %v1120, %v1119
        %v1122 = vextract.low.u32 %v1121
        %v1123 = vextract.high.u32 %v1121
        %v1124 = vmul.u32.u64.compose %v1120, %v1115
        %v1125 = vextract.low.u32 %v1124
        %v1126 = vextract.high.u32 %v1124
        %v1127 = vmul.u32 %v1120, %v1111
        %v1128 = vadd.s32 %v1123, %v1125
        %vm1129 = vc.u32 %v1123, %v1125
        %v1130 = vadd.s32 %v1126, 1
        %v1131 = vsel %vm1129, %v1130, %v1126
        %v1132 = vadd.s32 %v1127, %v1131
        %v1133 = vadd.s32 %v1132, 536870912
        %v1134 = vshrl.u32 %v1133, 30
        %v1135 = vshll.u32 %v1134, 30
        %v1136 = vsub.s32 %v1132, %v1135
        %vm1137 = vcmp.lt.s32.totalorder %v1136, 0
        %v1138 = vsub.s32 0, %v1136
        %v1139 = vsel %vm1137, %v1138, %v1136
        %v1140 = vclz %v1139
        %v1141 = vsub.s32 %v1140, 2
        %vm1142 = vcmp.gt.s32.totalorder 0, %v1141
        %v1143 = vsel %vm1142, 0, %v1141
        %v1144 = vsub.s32 32, %v1143
        %v1145 = vshll.u32 %v1136, %v1143
        %v1146 = vshrl.u32 %v1128, %v1144
        %v1147 = vor.u32 %v1145, %v1146
        %v1148 = vsub.s32 4294967266, %v1143
        %v1149 = vadd.s32 %v1148, 127
        %v1150 = vshll.u32 %v1149, 23
        %v1151 = vor.u32 4788187, %v1150
        %v1152 = vand.u32 2147483647, %v1151
        %v1154 = vcvt.s32.f32 %v1147
        %v1155 = vmul.f32 %v1154, %v1152
        %v1156 = vxor.u32 %v1155, 2147483648
        %v1157 = vsel %vm1074, %v1156, %v1155
        %v1158 = vsub.s32 4, %v1134
        %v1159 = vsel %vm1074, %v1158, %v1134
        %v1160 = vsel %vm1073, %v755, %v1157
        %v1161 = vsel %vm1073, 0, %v1159
        %v1162 = vcosq.f32.pop %v1160
        %v1163 = vsinq.f32.pop %v1160
        %vm1164 = vweird.f32 %v755
        %v1165 = vadd.s32 %v1161, 3
        %v1166 = vand.u32 %v1165, 3
        %vm1167 = vcmp.lt.s32.totalorder %v1166, 2
        %vm1168 = vcmp.eq.s32.totalorder %v1166, 0
        %v1169 = vxor.u32 %v1163, 2147483648
        %v1170 = vsel %vm1168, %v1162, %v1169
        %vm1171 = vcmp.eq.s32.totalorder %v1166, 2
        %v1172 = vxor.u32 %v1162, 2147483648
        %v1173 = vsel %vm1171, %v1172, %v1163
        %v1174 = vsel %vm1167, %v1170, %v1173
        %v1175 = vsel %vm1164, nan, %v1174
        %v1176 = vand.u32 2147483647, %v756
        %vm1177 = vcmp.le.f32.partialorder %v1176, 0.7853982
        %vm1178 = vcmp.lt.s32.totalorder %v756, 0
        %v1179 = vand.u32 %v756, 2139095040
        %v1180 = vshrl.u32 %v1179, 23
        %v1181 = vsub.s32 %v1180, 127
        %v1182 = vand.u32 2147483647, %v756
        %v1183 = vand.u32 %v1182, 8388607
        %v1184 = vor.u32 %v1183, 8388608
        %v1185 = vsub.s32 0, %v1184
        %v1186 = vadd.s32 %v1181, 1
        %vm1187 = vcmp.gt.s32.totalorder %v1186, 0
        %v1188 = vsel %vm1187, %v1186, 0
        %v1189 = vshrl.u32 %v1188, 5
        %v1190 = vand.u32 %v1188, 31
        %v1191 = vsub.s32 32, %v1190
        %v1192 = vshrl.u32 683565275, %v1191
        %v1193 = vshll.u32 683565275, %v1190
        %v1194 = vshrl.u32 2475754826, %v1191
        %v1195 = vor.u32 %v1193, %v1194
        %v1196 = vshll.u32 2475754826, %v1190
        %v1197 = vshrl.u32 2131351028, %v1191
        %v1198 = vor.u32 %v1196, %v1197
        %v1199 = vshll.u32 2131351028, %v1190
        %v1200 = vshrl.u32 2102212464, %v1191
        %v1201 = vor.u32 %v1199, %v1200
        %v1202 = vshll.u32 2102212464, %v1190
        %v1203 = vshrl.u32 920167782, %v1191
        %v1204 = vor.u32 %v1202, %v1203
        %v1205 = vshll.u32 920167782, %v1190
        %v1206 = vshrl.u32 1326507024, %v1191
        %v1207 = vor.u32 %v1205, %v1206
        %vm1208 = vcmp.lt.s32.totalorder %v1189, 1
        %vm1209 = vcmp.lt.s32.totalorder %v1189, 2
        %vm1210 = vcmp.lt.s32.totalorder %v1189, 3
        %vm1211 = vcmp.lt.s32.totalorder %v1189, 4
        %v1212 = vsel %vm1208, %v1192, %v1195
        %v1213 = vsel %vm1211, %v1201, 2102212464
        %v1214 = vsel %vm1210, %v1198, %v1213
        %v1215 = vsel %vm1209, %v1212, %v1214
        %v1216 = vsel %vm1208, %v1195, %v1198
        %v1217 = vsel %vm1211, %v1204, 920167782
        %v1218 = vsel %vm1210, %v1201, %v1217
        %v1219 = vsel %vm1209, %v1216, %v1218
        %v1220 = vsel %vm1208, %v1198, %v1201
        %v1221 = vsel %vm1211, %v1207, 1326507024
        %v1222 = vsel %vm1210, %v1204, %v1221
        %v1223 = vsel %vm1209, %v1220, %v1222
        %v1224 = vshll.u32 %v1184, 8
        %v1225 = vmul.u32.u64.compose %v1224, %v1223
        %v1226 = vextract.low.u32 %v1225
        %v1227 = vextract.high.u32 %v1225
        %v1228 = vmul.u32.u64.compose %v1224, %v1219
        %v1229 = vextract.low.u32 %v1228
        %v1230 = vextract.high.u32 %v1228
        %v1231 = vmul.u32 %v1224, %v1215
        %v1232 = vadd.s32 %v1227, %v1229
        %vm1233 = vc.u32 %v1227, %v1229
        %v1234 = vadd.s32 %v1230, 1
        %v1235 = vsel %vm1233, %v1234, %v1230
        %v1236 = vadd.s32 %v1231, %v1235
        %v1237 = vadd.s32 %v1236, 536870912
        %v1238 = vshrl.u32 %v1237, 30
        %v1239 = vshll.u32 %v1238, 30
        %v1240 = vsub.s32 %v1236, %v1239
        %vm1241 = vcmp.lt.s32.totalorder %v1240, 0
        %v1242 = vsub.s32 0, %v1240
        %v1243 = vsel %vm1241, %v1242, %v1240
        %v1244 = vclz %v1243
        %v1245 = vsub.s32 %v1244, 2
        %vm1246 = vcmp.gt.s32.totalorder 0, %v1245
        %v1247 = vsel %vm1246, 0, %v1245
        %v1248 = vsub.s32 32, %v1247
        %v1249 = vshll.u32 %v1240, %v1247
        %v1250 = vshrl.u32 %v1232, %v1248
        %v1251 = vor.u32 %v1249, %v1250
        %v1252 = vsub.s32 4294967266, %v1247
        %v1253 = vadd.s32 %v1252, 127
        %v1254 = vshll.u32 %v1253, 23
        %v1255 = vor.u32 4788187, %v1254
        %v1256 = vand.u32 2147483647, %v1255
        %v1258 = vcvt.s32.f32 %v1251
        %v1259 = vmul.f32 %v1258, %v1256
        %v1260 = vxor.u32 %v1259, 2147483648
        %v1261 = vsel %vm1178, %v1260, %v1259
        %v1262 = vsub.s32 4, %v1238
        %v1263 = vsel %vm1178, %v1262, %v1238
        %v1264 = vsel %vm1177, %v756, %v1261
        %v1265 = vsel %vm1177, 0, %v1263
        %v1266 = vcosq.f32.pop %v1264
        %v1267 = vsinq.f32.pop %v1264
        %vm1268 = vweird.f32 %v756
        %v1269 = vadd.s32 %v1265, 3
        %v1270 = vand.u32 %v1269, 3
        %vm1271 = vcmp.lt.s32.totalorder %v1270, 2
        %vm1272 = vcmp.eq.s32.totalorder %v1270, 0
        %v1273 = vxor.u32 %v1267, 2147483648
        %v1274 = vsel %vm1272, %v1266, %v1273
        %vm1275 = vcmp.eq.s32.totalorder %v1270, 2
        %v1276 = vxor.u32 %v1266, 2147483648
        %v1277 = vsel %vm1275, %v1276, %v1267
        %v1278 = vsel %vm1271, %v1274, %v1277
        %v1279 = vsel %vm1268, nan, %v1278
        %v1280 = vand.u32 2147483647, %v757
        %vm1281 = vcmp.le.f32.partialorder %v1280, 0.7853982
        %vm1282 = vcmp.lt.s32.totalorder %v757, 0
        %v1283 = vand.u32 %v757, 2139095040
        %v1284 = vshrl.u32 %v1283, 23
        %v1285 = vsub.s32 %v1284, 127
        %v1286 = vand.u32 2147483647, %v757
        %v1287 = vand.u32 %v1286, 8388607
        %v1288 = vor.u32 %v1287, 8388608
        %v1289 = vsub.s32 0, %v1288
        %v1290 = vadd.s32 %v1285, 1
        %vm1291 = vcmp.gt.s32.totalorder %v1290, 0
        %v1292 = vsel %vm1291, %v1290, 0
        %v1293 = vshrl.u32 %v1292, 5
        %v1294 = vand.u32 %v1292, 31
        %v1295 = vsub.s32 32, %v1294
        %v1296 = vshrl.u32 683565275, %v1295
        %v1297 = vshll.u32 683565275, %v1294
        %v1298 = vshrl.u32 2475754826, %v1295
        %v1299 = vor.u32 %v1297, %v1298
        %v1300 = vshll.u32 2475754826, %v1294
        %v1301 = vshrl.u32 2131351028, %v1295
        %v1302 = vor.u32 %v1300, %v1301
        %v1303 = vshll.u32 2131351028, %v1294
        %v1304 = vshrl.u32 2102212464, %v1295
        %v1305 = vor.u32 %v1303, %v1304
        %v1306 = vshll.u32 2102212464, %v1294
        %v1307 = vshrl.u32 920167782, %v1295
        %v1308 = vor.u32 %v1306, %v1307
        %v1309 = vshll.u32 920167782, %v1294
        %v1310 = vshrl.u32 1326507024, %v1295
        %v1311 = vor.u32 %v1309, %v1310
        %vm1312 = vcmp.lt.s32.totalorder %v1293, 1
        %vm1313 = vcmp.lt.s32.totalorder %v1293, 2
        %vm1314 = vcmp.lt.s32.totalorder %v1293, 3
        %vm1315 = vcmp.lt.s32.totalorder %v1293, 4
        %v1316 = vsel %vm1312, %v1296, %v1299
        %v1317 = vsel %vm1315, %v1305, 2102212464
        %v1318 = vsel %vm1314, %v1302, %v1317
        %v1319 = vsel %vm1313, %v1316, %v1318
        %v1320 = vsel %vm1312, %v1299, %v1302
        %v1321 = vsel %vm1315, %v1308, 920167782
        %v1322 = vsel %vm1314, %v1305, %v1321
        %v1323 = vsel %vm1313, %v1320, %v1322
        %v1324 = vsel %vm1312, %v1302, %v1305
        %v1325 = vsel %vm1315, %v1311, 1326507024
        %v1326 = vsel %vm1314, %v1308, %v1325
        %v1327 = vsel %vm1313, %v1324, %v1326
        %v1328 = vshll.u32 %v1288, 8
        %v1329 = vmul.u32.u64.compose %v1328, %v1327
        %v1330 = vextract.low.u32 %v1329
        %v1331 = vextract.high.u32 %v1329
        %v1332 = vmul.u32.u64.compose %v1328, %v1323
        %v1333 = vextract.low.u32 %v1332
        %v1334 = vextract.high.u32 %v1332
        %v1335 = vmul.u32 %v1328, %v1319
        %v1336 = vadd.s32 %v1331, %v1333
        %vm1337 = vc.u32 %v1331, %v1333
        %v1338 = vadd.s32 %v1334, 1
        %v1339 = vsel %vm1337, %v1338, %v1334
        %v1340 = vadd.s32 %v1335, %v1339
        %v1341 = vadd.s32 %v1340, 536870912
        %v1342 = vshrl.u32 %v1341, 30
        %v1343 = vshll.u32 %v1342, 30
        %v1344 = vsub.s32 %v1340, %v1343
        %vm1345 = vcmp.lt.s32.totalorder %v1344, 0
        %v1346 = vsub.s32 0, %v1344
        %v1347 = vsel %vm1345, %v1346, %v1344
        %v1348 = vclz %v1347
        %v1349 = vsub.s32 %v1348, 2
        %vm1350 = vcmp.gt.s32.totalorder 0, %v1349
        %v1351 = vsel %vm1350, 0, %v1349
        %v1352 = vsub.s32 32, %v1351
        %v1353 = vshll.u32 %v1344, %v1351
        %v1354 = vshrl.u32 %v1336, %v1352
        %v1355 = vor.u32 %v1353, %v1354
        %v1356 = vsub.s32 4294967266, %v1351
        %v1357 = vadd.s32 %v1356, 127
        %v1358 = vshll.u32 %v1357, 23
        %v1359 = vor.u32 4788187, %v1358
        %v1360 = vand.u32 2147483647, %v1359
        %v1362 = vcvt.s32.f32 %v1355
        %v1363 = vmul.f32 %v1362, %v1360
        %v1364 = vxor.u32 %v1363, 2147483648
        %v1365 = vsel %vm1282, %v1364, %v1363
        %v1366 = vsub.s32 4, %v1342
        %v1367 = vsel %vm1282, %v1366, %v1342
        %v1368 = vsel %vm1281, %v757, %v1365
        %v1369 = vsel %vm1281, 0, %v1367
        %v1370 = vcosq.f32.pop %v1368
        %v1371 = vsinq.f32.pop %v1368
        %vm1372 = vweird.f32 %v757
        %v1373 = vadd.s32 %v1369, 3
        %v1374 = vand.u32 %v1373, 3
        %vm1375 = vcmp.lt.s32.totalorder %v1374, 2
        %vm1376 = vcmp.eq.s32.totalorder %v1374, 0
        %v1377 = vxor.u32 %v1371, 2147483648
        %v1378 = vsel %vm1376, %v1370, %v1377
        %vm1379 = vcmp.eq.s32.totalorder %v1374, 2
        %v1380 = vxor.u32 %v1370, 2147483648
        %v1381 = vsel %vm1379, %v1380, %v1371
        %v1382 = vsel %vm1375, %v1378, %v1381
        %v1383 = vsel %vm1372, nan, %v1382
        %v1384 = vand.u32 2147483647, %v758
        %vm1385 = vcmp.le.f32.partialorder %v1384, 0.7853982
        %vm1386 = vcmp.lt.s32.totalorder %v758, 0
        %v1387 = vand.u32 %v758, 2139095040
        %v1388 = vshrl.u32 %v1387, 23
        %v1389 = vsub.s32 %v1388, 127
        %v1390 = vand.u32 2147483647, %v758
        %v1391 = vand.u32 %v1390, 8388607
        %v1392 = vor.u32 %v1391, 8388608
        %v1393 = vsub.s32 0, %v1392
        %v1394 = vadd.s32 %v1389, 1
        %vm1395 = vcmp.gt.s32.totalorder %v1394, 0
        %v1396 = vsel %vm1395, %v1394, 0
        %v1397 = vshrl.u32 %v1396, 5
        %v1398 = vand.u32 %v1396, 31
        %v1399 = vsub.s32 32, %v1398
        %v1400 = vshrl.u32 683565275, %v1399
        %v1401 = vshll.u32 683565275, %v1398
        %v1402 = vshrl.u32 2475754826, %v1399
        %v1403 = vor.u32 %v1401, %v1402
        %v1404 = vshll.u32 2475754826, %v1398
        %v1405 = vshrl.u32 2131351028, %v1399
        %v1406 = vor.u32 %v1404, %v1405
        %v1407 = vshll.u32 2131351028, %v1398
        %v1408 = vshrl.u32 2102212464, %v1399
        %v1409 = vor.u32 %v1407, %v1408
        %v1410 = vshll.u32 2102212464, %v1398
        %v1411 = vshrl.u32 920167782, %v1399
        %v1412 = vor.u32 %v1410, %v1411
        %v1413 = vshll.u32 920167782, %v1398
        %v1414 = vshrl.u32 1326507024, %v1399
        %v1415 = vor.u32 %v1413, %v1414
        %vm1416 = vcmp.lt.s32.totalorder %v1397, 1
        %vm1417 = vcmp.lt.s32.totalorder %v1397, 2
        %vm1418 = vcmp.lt.s32.totalorder %v1397, 3
        %vm1419 = vcmp.lt.s32.totalorder %v1397, 4
        %v1420 = vsel %vm1416, %v1400, %v1403
        %v1421 = vsel %vm1419, %v1409, 2102212464
        %v1422 = vsel %vm1418, %v1406, %v1421
        %v1423 = vsel %vm1417, %v1420, %v1422
        %v1424 = vsel %vm1416, %v1403, %v1406
        %v1425 = vsel %vm1419, %v1412, 920167782
        %v1426 = vsel %vm1418, %v1409, %v1425
        %v1427 = vsel %vm1417, %v1424, %v1426
        %v1428 = vsel %vm1416, %v1406, %v1409
        %v1429 = vsel %vm1419, %v1415, 1326507024
        %v1430 = vsel %vm1418, %v1412, %v1429
        %v1431 = vsel %vm1417, %v1428, %v1430
        %v1432 = vshll.u32 %v1392, 8
        %v1433 = vmul.u32.u64.compose %v1432, %v1431
        %v1434 = vextract.low.u32 %v1433
        %v1435 = vextract.high.u32 %v1433
        %v1436 = vmul.u32.u64.compose %v1432, %v1427
        %v1437 = vextract.low.u32 %v1436
        %v1438 = vextract.high.u32 %v1436
        %v1439 = vmul.u32 %v1432, %v1423
        %v1440 = vadd.s32 %v1435, %v1437
        %vm1441 = vc.u32 %v1435, %v1437
        %v1442 = vadd.s32 %v1438, 1
        %v1443 = vsel %vm1441, %v1442, %v1438
        %v1444 = vadd.s32 %v1439, %v1443
        %v1445 = vadd.s32 %v1444, 536870912
        %v1446 = vshrl.u32 %v1445, 30
        %v1447 = vshll.u32 %v1446, 30
        %v1448 = vsub.s32 %v1444, %v1447
        %vm1449 = vcmp.lt.s32.totalorder %v1448, 0
        %v1450 = vsub.s32 0, %v1448
        %v1451 = vsel %vm1449, %v1450, %v1448
        %v1452 = vclz %v1451
        %v1453 = vsub.s32 %v1452, 2
        %vm1454 = vcmp.gt.s32.totalorder 0, %v1453
        %v1455 = vsel %vm1454, 0, %v1453
        %v1456 = vsub.s32 32, %v1455
        %v1457 = vshll.u32 %v1448, %v1455
        %v1458 = vshrl.u32 %v1440, %v1456
        %v1459 = vor.u32 %v1457, %v1458
        %v1460 = vsub.s32 4294967266, %v1455
        %v1461 = vadd.s32 %v1460, 127
        %v1462 = vshll.u32 %v1461, 23
        %v1463 = vor.u32 4788187, %v1462
        %v1464 = vand.u32 2147483647, %v1463
        %v1466 = vcvt.s32.f32 %v1459
        %v1467 = vmul.f32 %v1466, %v1464
        %v1468 = vxor.u32 %v1467, 2147483648
        %v1469 = vsel %vm1386, %v1468, %v1467
        %v1470 = vsub.s32 4, %v1446
        %v1471 = vsel %vm1386, %v1470, %v1446
        %v1472 = vsel %vm1385, %v758, %v1469
        %v1473 = vsel %vm1385, 0, %v1471
        %v1474 = vcosq.f32.pop %v1472
        %v1475 = vsinq.f32.pop %v1472
        %vm1476 = vweird.f32 %v758
        %v1477 = vadd.s32 %v1473, 3
        %v1478 = vand.u32 %v1477, 3
        %vm1479 = vcmp.lt.s32.totalorder %v1478, 2
        %vm1480 = vcmp.eq.s32.totalorder %v1478, 0
        %v1481 = vxor.u32 %v1475, 2147483648
        %v1482 = vsel %vm1480, %v1474, %v1481
        %vm1483 = vcmp.eq.s32.totalorder %v1478, 2
        %v1484 = vxor.u32 %v1474, 2147483648
        %v1485 = vsel %vm1483, %v1484, %v1475
        %v1486 = vsel %vm1479, %v1482, %v1485
        %v1487 = vsel %vm1476, nan, %v1486
        %v1488 = vand.u32 2147483647, %v759
        %vm1489 = vcmp.le.f32.partialorder %v1488, 0.7853982
        %vm1490 = vcmp.lt.s32.totalorder %v759, 0
        %v1491 = vand.u32 %v759, 2139095040
        %v1492 = vshrl.u32 %v1491, 23
        %v1493 = vsub.s32 %v1492, 127
        %v1494 = vand.u32 2147483647, %v759
        %v1495 = vand.u32 %v1494, 8388607
        %v1496 = vor.u32 %v1495, 8388608
        %v1497 = vsub.s32 0, %v1496
        %v1498 = vadd.s32 %v1493, 1
        %vm1499 = vcmp.gt.s32.totalorder %v1498, 0
        %v1500 = vsel %vm1499, %v1498, 0
        %v1501 = vshrl.u32 %v1500, 5
        %v1502 = vand.u32 %v1500, 31
        %v1503 = vsub.s32 32, %v1502
        %v1504 = vshrl.u32 683565275, %v1503
        %v1505 = vshll.u32 683565275, %v1502
        %v1506 = vshrl.u32 2475754826, %v1503
        %v1507 = vor.u32 %v1505, %v1506
        %v1508 = vshll.u32 2475754826, %v1502
        %v1509 = vshrl.u32 2131351028, %v1503
        %v1510 = vor.u32 %v1508, %v1509
        %v1511 = vshll.u32 2131351028, %v1502
        %v1512 = vshrl.u32 2102212464, %v1503
        %v1513 = vor.u32 %v1511, %v1512
        %v1514 = vshll.u32 2102212464, %v1502
        %v1515 = vshrl.u32 920167782, %v1503
        %v1516 = vor.u32 %v1514, %v1515
        %v1517 = vshll.u32 920167782, %v1502
        %v1518 = vshrl.u32 1326507024, %v1503
        %v1519 = vor.u32 %v1517, %v1518
        %vm1520 = vcmp.lt.s32.totalorder %v1501, 1
        %vm1521 = vcmp.lt.s32.totalorder %v1501, 2
        %vm1522 = vcmp.lt.s32.totalorder %v1501, 3
        %vm1523 = vcmp.lt.s32.totalorder %v1501, 4
        %v1524 = vsel %vm1520, %v1504, %v1507
        %v1525 = vsel %vm1523, %v1513, 2102212464
        %v1526 = vsel %vm1522, %v1510, %v1525
        %v1527 = vsel %vm1521, %v1524, %v1526
        %v1528 = vsel %vm1520, %v1507, %v1510
        %v1529 = vsel %vm1523, %v1516, 920167782
        %v1530 = vsel %vm1522, %v1513, %v1529
        %v1531 = vsel %vm1521, %v1528, %v1530
        %v1532 = vsel %vm1520, %v1510, %v1513
        %v1533 = vsel %vm1523, %v1519, 1326507024
        %v1534 = vsel %vm1522, %v1516, %v1533
        %v1535 = vsel %vm1521, %v1532, %v1534
        %v1536 = vshll.u32 %v1496, 8
        %v1537 = vmul.u32.u64.compose %v1536, %v1535
        %v1538 = vextract.low.u32 %v1537
        %v1539 = vextract.high.u32 %v1537
        %v1540 = vmul.u32.u64.compose %v1536, %v1531
        %v1541 = vextract.low.u32 %v1540
        %v1542 = vextract.high.u32 %v1540
        %v1543 = vmul.u32 %v1536, %v1527
        %v1544 = vadd.s32 %v1539, %v1541
        %vm1545 = vc.u32 %v1539, %v1541
        %v1546 = vadd.s32 %v1542, 1
        %v1547 = vsel %vm1545, %v1546, %v1542
        %v1548 = vadd.s32 %v1543, %v1547
        %v1549 = vadd.s32 %v1548, 536870912
        %v1550 = vshrl.u32 %v1549, 30
        %v1551 = vshll.u32 %v1550, 30
        %v1552 = vsub.s32 %v1548, %v1551
        %vm1553 = vcmp.lt.s32.totalorder %v1552, 0
        %v1554 = vsub.s32 0, %v1552
        %v1555 = vsel %vm1553, %v1554, %v1552
        %v1556 = vclz %v1555
        %v1557 = vsub.s32 %v1556, 2
        %vm1558 = vcmp.gt.s32.totalorder 0, %v1557
        %v1559 = vsel %vm1558, 0, %v1557
        %v1560 = vsub.s32 32, %v1559
        %v1561 = vshll.u32 %v1552, %v1559
        %v1562 = vshrl.u32 %v1544, %v1560
        %v1563 = vor.u32 %v1561, %v1562
        %v1564 = vsub.s32 4294967266, %v1559
        %v1565 = vadd.s32 %v1564, 127
        %v1566 = vshll.u32 %v1565, 23
        %v1567 = vor.u32 4788187, %v1566
        %v1568 = vand.u32 2147483647, %v1567
        %v1570 = vcvt.s32.f32 %v1563
        %v1571 = vmul.f32 %v1570, %v1568
        %v1572 = vxor.u32 %v1571, 2147483648
        %v1573 = vsel %vm1490, %v1572, %v1571
        %v1574 = vsub.s32 4, %v1550
        %v1575 = vsel %vm1490, %v1574, %v1550
        %v1576 = vsel %vm1489, %v759, %v1573
        %v1577 = vsel %vm1489, 0, %v1575
        %v1578 = vcosq.f32.pop %v1576
        %v1579 = vsinq.f32.pop %v1576
        %vm1580 = vweird.f32 %v759
        %v1581 = vadd.s32 %v1577, 3
        %v1582 = vand.u32 %v1581, 3
        %vm1583 = vcmp.lt.s32.totalorder %v1582, 2
        %vm1584 = vcmp.eq.s32.totalorder %v1582, 0
        %v1585 = vxor.u32 %v1579, 2147483648
        %v1586 = vsel %vm1584, %v1578, %v1585
        %vm1587 = vcmp.eq.s32.totalorder %v1582, 2
        %v1588 = vxor.u32 %v1578, 2147483648
        %v1589 = vsel %vm1587, %v1588, %v1579
        %v1590 = vsel %vm1583, %v1586, %v1589
        %v1591 = vsel %vm1580, nan, %v1590
        %v1592 = vmul.f32 %v738, %v863
        %v1593 = vmul.f32 %v739, %v967
        %v1594 = vmul.f32 %v740, %v1071
        %v1595 = vmul.f32 %v741, %v1175
        %v1596 = vmul.f32 %v742, %v1279
        %v1597 = vmul.f32 %v743, %v1383
        %v1598 = vmul.f32 %v744, %v1487
        %v1599 = vmul.f32 %v745, %v1591
        %1600 = vst [vmem:[%s164] sm:$0xff] %v1592
        %1601 = vst [vmem:[%s164 + $0x8] sm:$0xff] %v1593
        %1602 = vst [vmem:[%s164 + $0x10] sm:$0xff] %v1594
        %1603 = vst [vmem:[%s164 + $0x18] sm:$0xff] %v1595
        %1604 = vst [vmem:[%s164 + $0x20] sm:$0xff] %v1596
        %1605 = vst [vmem:[%s164 + $0x28] sm:$0xff] %v1597
        %1606 = vst [vmem:[%s164 + $0x30] sm:$0xff] %v1598
        %1607 = vst [vmem:[%s164 + $0x38] sm:$0xff] %v1599
        %s1608 = sand.u32 %s93, 1
        %s1609 = scalar_lea.sflag [#allocation3], %s1608
        %s1610 = sand.u32 %s93, 1
        %s1611 = smul.addr %s1610, 64
        %s1612 = scalar_lea.vmem [#allocation2], %s1611
        // Predicated region
        $region33: #{tpu_custom_call.1} parent=31 // pred_check
          %p1613 = pneg %p103
        $region34: #{tpu_custom_call.1} parent=31 // pred_check_branch
          %1615 = sbr.rel (%p1613) target = $region36
        $region35: #{tpu_custom_call.1} parent=31 // pred_region
          %s1616 = smul.u32 8, %s17
          %s1618 = ssub.s32 1024, 1024
          %1619 = vsyncadd %s1609, %s1618
          %s1620 = smul.addr %s1616, 128
          %s1621 = scalar_lea.hbm %s3, %s1620
          %s1622 = sshll.u32 %s1612, 4
          %s1623 = int_to_ptr.vmem [resolvable:$true] %s1622
          %1628 = dma.vmem_to_hbm [thread:$0]  %s1623, 1024, %s1621, %s1609, 128, 128, 8
        $region36: #{tpu_custom_call.1} parent=31 // pred_fallthru
          _
      $region32: #{tpu_custom_call.1} parent=5 // pred_fallthru
        _
      %p1629 = scmp.le.s32.totalorder 2, %s12
      // Predicated region
      $region37: #{tpu_custom_call.1} parent=5 // pred_check
        %p1630 = pneg %p1629
      $region38: #{tpu_custom_call.1} parent=5 // pred_check_branch
        %1632 = sbr.rel (%p1630) target = $region40
      $region39: #{tpu_custom_call.1} parent=5 // pred_region
        %s1633 = ssub.s32 %s12, 2
        // Predicated region
        $region41: #{tpu_custom_call.1} parent=39 // pred_check
          %p1634 = pneg %p109
        $region42: #{tpu_custom_call.1} parent=39 // pred_check_branch
          %1636 = sbr.rel (%p1634) target = $region44
        $region43: #{tpu_custom_call.1} parent=39 // pred_region
          %s1637 = sand.u32 %s94, 1
          %s1638 = scalar_lea.sflag [#allocation3], %s1637
          %s1639 = sand.u32 %s94, 1
          %s1640 = smul.addr %s1639, 64
          %s1641 = scalar_lea.vmem [#allocation2], %s1640
          %1642 = dma.done %s1638, 1024
        $region44: #{tpu_custom_call.1} parent=39 // pred_fallthru
          _
      $region40: #{tpu_custom_call.1} parent=5 // pred_fallthru
        _
    $region6: #{tpu_custom_call.1} parent=1 // loop_footer
      %s16 = sadd.s32 1, %s12
    $region7: #{tpu_custom_call.1} parent=1 // loop_footer_branch
      %11 = sbr.rel target = $region3
    $region8: #{tpu_custom_call.1} parent=1 // loop_exit
      _
    %1643 = vsyncpa [#allocation3], 1
    %s1644 = scalar_lea.sflag [#allocation3], 1
    %1645 = vsyncpa %s1644, 1

// kernel: tpu_custom_call.1
$region0: #{tpu_custom_call.1}
  #allocation0 [shape = 'u32[]', space=smem, size = 0x4, offset = 0x4, fixed_abs, tag = 'smem constant byte address 0x4 - core index']
  #allocation1 [shape = 'u32[144,128]{1,0:T(1,128)}', space=vmem, size = 0x12000, scoped, tag = 'internal scratch']
  %s0 = inlined_call_operand.vmem [shape: f32[128,8], index: 0, kind: input, shape index: {}]
  %s1 = inlined_call_operand.vmem [shape: f32[8,128], index: 1, kind: input, shape index: {}]
  %s2 = inlined_call_operand.vmem [shape: f32[1,128], index: 2, kind: input, shape index: {}]
  %s3 = inlined_call_operand.hbm [shape: f32[128,128], index: 3, kind: output, shape index: {}]
  %s4 = sld [smem:[#allocation0]]
  $region45: #{tpu_custom_call.1} parent=0
    _
  %s6 = ssub.s32 1, %s4
  %s7 = scalar_select 0, %s6, %s4
  $region1: #{tpu_custom_call.1} parent=0
    #allocation2 [shape = 'u8[65536]{0}', space=vmem, size = 0x10000, scoped, tag = 'output window, operand 0']
    #allocation3 [shape = 's32[2]{0}', space=sflag, size = 0x8, scoped, tag = 'scoped memory for tpu_custom_call.1']
    %8 = vsyncpa [#allocation3], 0
    %s9 = scalar_lea.sflag [#allocation3], 1
    %10 = vsyncpa %s9, 0
    loop: start=0, step=1, limit=4
    $region2: #{tpu_custom_call.1} parent=1 // loop_pre_header
      _
    $region3: #{tpu_custom_call.1} parent=1 // loop_header
      %s12 = sphi 0, %s16
      %p13 = scmp.ge.s32.totalorder %s12, 4
      %s22 = sphi 0, %s24
      %s25 = sphi 0, %s22
      %s26 = sphi 0, %s25
      %s42 = sphi 0, %s26
      %s46 = sphi 0, %s46
      %s48 = sphi 0, %s46
      %s49 = sphi 0, %s48
      %s63 = sphi 0, %s49
      %s67 = sphi 0, %s67
      %s69 = sphi 0, %s67
      %s70 = sphi 0, %s69
      %s84 = sphi 0, %s70
      %s90 = sphi 0, %s92
      %s93 = sphi 0, %s90
      %s94 = sphi 0, %s93
      %s110 = sphi 0, %s94
    $region4: #{tpu_custom_call.1} parent=1 // loop_header_branch
      %15 = sbr.rel (%p13) target = $region8
    $region5: #{tpu_custom_call.1} parent=1 // loop_body
      %s17 = ssub.s32 %s12, 1
      %s18 = ssub.s32 %s12, 2
      %s19 = sadd.s32 %s12, 1
      %s20 = ssub.s32 %s12, %s19
      %p21 = scmp.eq.s32.totalorder %s20, 0
      %s23 = sadd.s32 %s22, 1
      %s24 = scalar_select %p21, %s22, %s23
      %p27 = pneg %p21
      %p28 = scmp.eq.s32.totalorder %s12, 1
      %p29 = por %p27, %p28
      %p30 = scmp.ne.s32.totalorder %s22, %s25
      %p31 = scmp.eq.s32.totalorder %s12, 0
      %p32 = por %p30, %p31
      %p33 = scmp.ne.s32.totalorder %s22, %s25
      %p34 = scmp.eq.s32.totalorder %s17, 1
      %p35 = por %p33, %p34
      %p36 = scmp.ne.s32.totalorder %s25, %s26
      %p37 = scmp.eq.s32.totalorder %s17, 0
      %p38 = por %p36, %p37
      %p39 = scmp.ne.s32.totalorder %s25, %s26
      %p40 = scmp.eq.s32.totalorder %s18, 1
      %p41 = por %p39, %p40
      %p43 = scmp.ne.s32.totalorder %s26, %s42
      %p44 = scmp.eq.s32.totalorder %s18, 0
      %p45 = por %p43, %p44
      %s47 = sadd.s32 %s46, 1
      %p50 = scmp.eq.s32.totalorder %s12, 1
      %p51 = scmp.ne.s32.totalorder %s46, %s48
      %p52 = scmp.eq.s32.totalorder %s12, 0
      %p53 = por %p51, %p52
      %p54 = scmp.ne.s32.totalorder %s46, %s48
      %p55 = scmp.eq.s32.totalorder %s17, 1
      %p56 = por %p54, %p55
      %p57 = scmp.ne.s32.totalorder %s48, %s49
      %p58 = scmp.eq.s32.totalorder %s17, 0
      %p59 = por %p57, %p58
      %p60 = scmp.ne.s32.totalorder %s48, %s49
      %p61 = scmp.eq.s32.totalorder %s18, 1
      %p62 = por %p60, %p61
      %p64 = scmp.ne.s32.totalorder %s49, %s63
      %p65 = scmp.eq.s32.totalorder %s18, 0
      %p66 = por %p64, %p65
      %s68 = sadd.s32 %s67, 1
      %p71 = scmp.eq.s32.totalorder %s12, 1
      %p72 = scmp.ne.s32.totalorder %s67, %s69
      %p73 = scmp.eq.s32.totalorder %s12, 0
      %p74 = por %p72, %p73
      %p75 = scmp.ne.s32.totalorder %s67, %s69
      %p76 = scmp.eq.s32.totalorder %s17, 1
      %p77 = por %p75, %p76
      %p78 = scmp.ne.s32.totalorder %s69, %s70
      %p79 = scmp.eq.s32.totalorder %s17, 0
      %p80 = por %p78, %p79
      %p81 = scmp.ne.s32.totalorder %s69, %s70
      %p82 = scmp.eq.s32.totalorder %s18, 1
      %p83 = por %p81, %p82
      %p85 = scmp.ne.s32.totalorder %s70, %s84
      %p86 = scmp.eq.s32.totalorder %s18, 0
      %p87 = por %p85, %p86
      %s88 = ssub.s32 %s12, %s19
      %p89 = scmp.eq.s32.totalorder %s88, 0
      %s91 = sadd.s32 %s90, 1
      %s92 = scalar_select %p89, %s90, %s91
      %p95 = pneg %p89
      %p96 = scmp.eq.s32.totalorder %s12, 1
      %p97 = por %p95, %p96
      %p98 = scmp.ne.s32.totalorder %s90, %s93
      %p99 = scmp.eq.s32.totalorder %s12, 0
      %p100 = por %p98, %p99
      %p101 = scmp.ne.s32.totalorder %s90, %s93
      %p102 = scmp.eq.s32.totalorder %s17, 1
      %p103 = por %p101, %p102
      %p104 = scmp.ne.s32.totalorder %s93, %s94
      %p105 = scmp.eq.s32.totalorder %s17, 0
      %p106 = por %p104, %p105
      %p107 = scmp.ne.s32.totalorder %s93, %s94
      %p108 = scmp.eq.s32.totalorder %s18, 1
      %p109 = por %p107, %p108
      %p111 = scmp.ne.s32.totalorder %s94, %s110
      %p112 = scmp.eq.s32.totalorder %s18, 0
      %p113 = por %p111, %p112
      %p114 = scmp.le.s32.totalorder 1, %s12
      %p115 = scmp.lt.s32.totalorder %s12, 3
      %p116 = pnand %p114, %p115
      %p117 = pneg %p116
      // Predicated region
      $region9: #{tpu_custom_call.1} parent=5 // pred_check
        _
      $region10: #{tpu_custom_call.1} parent=5 // pred_check_branch
        %119 = sbr.rel (%p116) target = $region12
      $region11: #{tpu_custom_call.1} parent=5 // pred_region
        %s120 = ssub.s32 %s12, 1
        // Predicated region
        $region13: #{tpu_custom_call.1} parent=11 // pred_check
          %p121 = pneg %p59
        $region14: #{tpu_custom_call.1} parent=11 // pred_check_branch
          %123 = sbr.rel (%p121) target = $region16
        $region15: #{tpu_custom_call.1} parent=11 // pred_region
          _
        $region16: #{tpu_custom_call.1} parent=11 // pred_fallthru
          _
        // Predicated region
        $region17: #{tpu_custom_call.1} parent=11 // pred_check
          %p124 = pneg %p80
        $region18: #{tpu_custom_call.1} parent=11 // pred_check_branch
          %126 = sbr.rel (%p124) target = $region20
        $region19: #{tpu_custom_call.1} parent=11 // pred_region
          _
        $region20: #{tpu_custom_call.1} parent=11 // pred_fallthru
          _
      $region12: #{tpu_custom_call.1} parent=5 // pred_fallthru
        _
      %p127 = scmp.lt.s32.totalorder %s12, 2
      // Predicated region
      $region21: #{tpu_custom_call.1} parent=5 // pred_check
        %p128 = pneg %p127
      $region22: #{tpu_custom_call.1} parent=5 // pred_check_branch
        %130 = sbr.rel (%p128) target = $region24
      $region23: #{tpu_custom_call.1} parent=5 // pred_region
        // Predicated region
        $region25: #{tpu_custom_call.1} parent=23 // pred_check
          %p131 = pneg %p32
        $region26: #{tpu_custom_call.1} parent=23 // pred_check_branch
          %133 = sbr.rel (%p131) target = $region28
        $region27: #{tpu_custom_call.1} parent=23 // pred_region
          %s134 = smul.u32 8, %s12
          %p135 = scmp.lt.s32.totalorder %s134, 15
          %s136 = scalar_select %p135, %s134, 15
          %s137 = smul.addr %s136, 8
          %s138 = scalar_lea.vmem %s0, %s137
          %s139 = smul.u32 8, %s12
        $region28: #{tpu_custom_call.1} parent=23 // pred_fallthru
          _
      $region24: #{tpu_custom_call.1} parent=5 // pred_fallthru
        _
      %p140 = scmp.le.s32.totalorder 1, %s12
      %p141 = scmp.lt.s32.totalorder %s12, 3
      %p142 = pnand %p140, %p141
      %p143 = pneg %p142
      // Predicated region
      $region29: #{tpu_custom_call.1} parent=5 // pred_check
        _
      $region30: #{tpu_custom_call.1} parent=5 // pred_check_branch
        %145 = sbr.rel (%p142) target = $region32
      $region31: #{tpu_custom_call.1} parent=5 // pred_region
        %s146 = ssub.s32 %s12, 1
        %s147 = smul.u32 8, %s17
        %p148 = scmp.lt.s32.totalorder %s147, 15
        %s149 = scalar_select %p148, %s147, 15
        %s150 = smul.addr %s149, 8
        %s151 = scalar_lea.vmem %s0, %s150
        %p152 = pneg %p38
        %p153 = pneg %p35
        %p154 = pneg %p59
        %p155 = pneg %p56
        %p156 = pneg %p80
        %p157 = pneg %p77
        %p158 = pneg %p106
        %p159 = pneg %p103
        %s160 = sand.u32 %s93, 1
        %s161 = scalar_lea.sflag [#allocation3], %s160
        %s162 = sand.u32 %s93, 1
        %s163 = smul.addr %s162, 64
        %s164 = scalar_lea.vmem [#allocation2], %s163
        %s165 = smul.u32 8, %s17
        %p166 = scmp.lt.s32.totalorder %s165, 15
        %s167 = scalar_select %p166, %s165, 15
        %s168 = smul.addr %s167, 8
        %s169 = scalar_lea.vmem %s0, %s168
        %s170 = smul.u32 8, %s17
        %s171 = smul.u32 8, %s17
        %v172 = vld [vmem:[%s169] sm:$0xff]
        %v173 = vld [vmem:[%s169 + $0x8] sm:$0xff]
        %v174 = vld [vmem:[%s169 + $0x10] sm:$0xff]
        %v175 = vld [vmem:[%s169 + $0x18] sm:$0xff]
        %v176 = vld [vmem:[%s169 + $0x20] sm:$0xff]
        %v177 = vld [vmem:[%s169 + $0x28] sm:$0xff]
        %v178 = vld [vmem:[%s169 + $0x30] sm:$0xff]
        %v179 = vld [vmem:[%s169 + $0x38] sm:$0xff]
        %v180 = vmul.f32 %v172, 0.2
        %v181 = vmul.f32 %v173, 0.2
        %v182 = vmul.f32 %v174, 0.2
        %v183 = vmul.f32 %v175, 0.2
        %v184 = vmul.f32 %v176, 0.2
        %v185 = vmul.f32 %v177, 0.2
        %v186 = vmul.f32 %v178, 0.2
        %v187 = vmul.f32 %v179, 0.2
        %189 = vset.pattern.permute.xlu0 0
        %190 = vperm.xlu0 %189, %v180
        %v191 = vpop.permute.xlu0 %190
        %194 = vset.pattern.permute.xlu0 0
        %195 = vperm.xlu0 %194, %v181
        %v196 = vpop.permute.xlu0 %195
        %199 = vset.pattern.permute.xlu0 0
        %200 = vperm.xlu0 %199, %v182
        %v201 = vpop.permute.xlu0 %200
        %204 = vset.pattern.permute.xlu0 0
        %205 = vperm.xlu0 %204, %v183
        %v206 = vpop.permute.xlu0 %205
        %209 = vset.pattern.permute.xlu0 0
        %210 = vperm.xlu0 %209, %v184
        %v211 = vpop.permute.xlu0 %210
        %214 = vset.pattern.permute.xlu0 0
        %215 = vperm.xlu0 %214, %v185
        %v216 = vpop.permute.xlu0 %215
        %219 = vset.pattern.permute.xlu0 0
        %220 = vperm.xlu0 %219, %v186
        %v221 = vpop.permute.xlu0 %220
        %224 = vset.pattern.permute.xlu0 0
        %225 = vperm.xlu0 %224, %v187
        %v226 = vpop.permute.xlu0 %225
        %228 = vset.pattern.permute.xlu0 1
        %229 = vperm.xlu0 %228, %v180
        %v230 = vpop.permute.xlu0 %229
        %232 = vset.pattern.permute.xlu0 1
        %233 = vperm.xlu0 %232, %v181
        %v234 = vpop.permute.xlu0 %233
        %236 = vset.pattern.permute.xlu0 1
        %237 = vperm.xlu0 %236, %v182
        %v238 = vpop.permute.xlu0 %237
        %240 = vset.pattern.permute.xlu0 1
        %241 = vperm.xlu0 %240, %v183
        %v242 = vpop.permute.xlu0 %241
        %244 = vset.pattern.permute.xlu0 1
        %245 = vperm.xlu0 %244, %v184
        %v246 = vpop.permute.xlu0 %245
        %248 = vset.pattern.permute.xlu0 1
        %249 = vperm.xlu0 %248, %v185
        %v250 = vpop.permute.xlu0 %249
        %252 = vset.pattern.permute.xlu0 1
        %253 = vperm.xlu0 %252, %v186
        %v254 = vpop.permute.xlu0 %253
        %256 = vset.pattern.permute.xlu0 1
        %257 = vperm.xlu0 %256, %v187
        %v258 = vpop.permute.xlu0 %257
        %260 = vset.pattern.permute.xlu0 2
        %261 = vperm.xlu0 %260, %v180
        %v262 = vpop.permute.xlu0 %261
        %264 = vset.pattern.permute.xlu0 2
        %265 = vperm.xlu0 %264, %v181
        %v266 = vpop.permute.xlu0 %265
        %268 = vset.pattern.permute.xlu0 2
        %269 = vperm.xlu0 %268, %v182
        %v270 = vpop.permute.xlu0 %269
        %272 = vset.pattern.permute.xlu0 2
        %273 = vperm.xlu0 %272, %v183
        %v274 = vpop.permute.xlu0 %273
        %276 = vset.pattern.permute.xlu0 2
        %277 = vperm.xlu0 %276, %v184
        %v278 = vpop.permute.xlu0 %277
        %280 = vset.pattern.permute.xlu0 2
        %281 = vperm.xlu0 %280, %v185
        %v282 = vpop.permute.xlu0 %281
        %284 = vset.pattern.permute.xlu0 2
        %285 = vperm.xlu0 %284, %v186
        %v286 = vpop.permute.xlu0 %285
        %288 = vset.pattern.permute.xlu0 2
        %289 = vperm.xlu0 %288, %v187
        %v290 = vpop.permute.xlu0 %289
        %292 = vset.pattern.permute.xlu0 3
        %293 = vperm.xlu0 %292, %v180
        %v294 = vpop.permute.xlu0 %293
        %296 = vset.pattern.permute.xlu0 3
        %297 = vperm.xlu0 %296, %v181
        %v298 = vpop.permute.xlu0 %297
        %300 = vset.pattern.permute.xlu0 3
        %301 = vperm.xlu0 %300, %v182
        %v302 = vpop.permute.xlu0 %301
        %304 = vset.pattern.permute.xlu0 3
        %305 = vperm.xlu0 %304, %v183
        %v306 = vpop.permute.xlu0 %305
        %308 = vset.pattern.permute.xlu0 3
        %309 = vperm.xlu0 %308, %v184
        %v310 = vpop.permute.xlu0 %309
        %312 = vset.pattern.permute.xlu0 3
        %313 = vperm.xlu0 %312, %v185
        %v314 = vpop.permute.xlu0 %313
        %316 = vset.pattern.permute.xlu0 3
        %317 = vperm.xlu0 %316, %v186
        %v318 = vpop.permute.xlu0 %317
        %320 = vset.pattern.permute.xlu0 3
        %321 = vperm.xlu0 %320, %v187
        %v322 = vpop.permute.xlu0 %321
        %324 = vset.pattern.permute.xlu0 4
        %325 = vperm.xlu0 %324, %v180
        %v326 = vpop.permute.xlu0 %325
        %328 = vset.pattern.permute.xlu0 4
        %329 = vperm.xlu0 %328, %v181
        %v330 = vpop.permute.xlu0 %329
        %332 = vset.pattern.permute.xlu0 4
        %333 = vperm.xlu0 %332, %v182
        %v334 = vpop.permute.xlu0 %333
        %336 = vset.pattern.permute.xlu0 4
        %337 = vperm.xlu0 %336, %v183
        %v338 = vpop.permute.xlu0 %337
        %340 = vset.pattern.permute.xlu0 4
        %341 = vperm.xlu0 %340, %v184
        %v342 = vpop.permute.xlu0 %341
        %344 = vset.pattern.permute.xlu0 4
        %345 = vperm.xlu0 %344, %v185
        %v346 = vpop.permute.xlu0 %345
        %348 = vset.pattern.permute.xlu0 4
        %349 = vperm.xlu0 %348, %v186
        %v350 = vpop.permute.xlu0 %349
        %352 = vset.pattern.permute.xlu0 4
        %353 = vperm.xlu0 %352, %v187
        %v354 = vpop.permute.xlu0 %353
        %356 = vset.pattern.permute.xlu0 5
        %357 = vperm.xlu0 %356, %v180
        %v358 = vpop.permute.xlu0 %357
        %360 = vset.pattern.permute.xlu0 5
        %361 = vperm.xlu0 %360, %v181
        %v362 = vpop.permute.xlu0 %361
        %364 = vset.pattern.permute.xlu0 5
        %365 = vperm.xlu0 %364, %v182
        %v366 = vpop.permute.xlu0 %365
        %368 = vset.pattern.permute.xlu0 5
        %369 = vperm.xlu0 %368, %v183
        %v370 = vpop.permute.xlu0 %369
        %372 = vset.pattern.permute.xlu0 5
        %373 = vperm.xlu0 %372, %v184
        %v374 = vpop.permute.xlu0 %373
        %376 = vset.pattern.permute.xlu0 5
        %377 = vperm.xlu0 %376, %v185
        %v378 = vpop.permute.xlu0 %377
        %380 = vset.pattern.permute.xlu0 5
        %381 = vperm.xlu0 %380, %v186
        %v382 = vpop.permute.xlu0 %381
        %384 = vset.pattern.permute.xlu0 5
        %385 = vperm.xlu0 %384, %v187
        %v386 = vpop.permute.xlu0 %385
        %388 = vset.pattern.permute.xlu0 6
        %389 = vperm.xlu0 %388, %v180
        %v390 = vpop.permute.xlu0 %389
        %392 = vset.pattern.permute.xlu0 6
        %393 = vperm.xlu0 %392, %v181
        %v394 = vpop.permute.xlu0 %393
        %396 = vset.pattern.permute.xlu0 6
        %397 = vperm.xlu0 %396, %v182
        %v398 = vpop.permute.xlu0 %397
        %400 = vset.pattern.permute.xlu0 6
        %401 = vperm.xlu0 %400, %v183
        %v402 = vpop.permute.xlu0 %401
        %404 = vset.pattern.permute.xlu0 6
        %405 = vperm.xlu0 %404, %v184
        %v406 = vpop.permute.xlu0 %405
        %408 = vset.pattern.permute.xlu0 6
        %409 = vperm.xlu0 %408, %v185
        %v410 = vpop.permute.xlu0 %409
        %412 = vset.pattern.permute.xlu0 6
        %413 = vperm.xlu0 %412, %v186
        %v414 = vpop.permute.xlu0 %413
        %416 = vset.pattern.permute.xlu0 6
        %417 = vperm.xlu0 %416, %v187
        %v418 = vpop.permute.xlu0 %417
        %420 = vset.pattern.permute.xlu0 7
        %421 = vperm.xlu0 %420, %v180
        %v422 = vpop.permute.xlu0 %421
        %424 = vset.pattern.permute.xlu0 7
        %425 = vperm.xlu0 %424, %v181
        %v426 = vpop.permute.xlu0 %425
        %428 = vset.pattern.permute.xlu0 7
        %429 = vperm.xlu0 %428, %v182
        %v430 = vpop.permute.xlu0 %429
        %432 = vset.pattern.permute.xlu0 7
        %433 = vperm.xlu0 %432, %v183
        %v434 = vpop.permute.xlu0 %433
        %436 = vset.pattern.permute.xlu0 7
        %437 = vperm.xlu0 %436, %v184
        %v438 = vpop.permute.xlu0 %437
        %440 = vset.pattern.permute.xlu0 7
        %441 = vperm.xlu0 %440, %v185
        %v442 = vpop.permute.xlu0 %441
        %444 = vset.pattern.permute.xlu0 7
        %445 = vperm.xlu0 %444, %v186
        %v446 = vpop.permute.xlu0 %445
        %448 = vset.pattern.permute.xlu0 7
        %449 = vperm.xlu0 %448, %v187
        %v450 = vpop.permute.xlu0 %449
        %vm452 = vcmask 130048
        %v453 = vsel %vm452, %v191, %v230
        %v454 = vsel %vm452, %v196, %v234
        %v455 = vsel %vm452, %v201, %v238
        %v456 = vsel %vm452, %v206, %v242
        %v457 = vsel %vm452, %v211, %v246
        %v458 = vsel %vm452, %v216, %v250
        %v459 = vsel %vm452, %v221, %v254
        %v460 = vsel %vm452, %v226, %v258
        %vm461 = vcmask 261120
        %v462 = vsel %vm461, %v453, %v262
        %v463 = vsel %vm461, %v454, %v266
        %v464 = vsel %vm461, %v455, %v270
        %v465 = vsel %vm461, %v456, %v274
        %v466 = vsel %vm461, %v457, %v278
        %v467 = vsel %vm461, %v458, %v282
        %v468 = vsel %vm461, %v459, %v286
        %v469 = vsel %vm461, %v460, %v290
        %vm470 = vcmask 392192
        %v471 = vsel %vm470, %v462, %v294
        %v472 = vsel %vm470, %v463, %v298
        %v473 = vsel %vm470, %v464, %v302
        %v474 = vsel %vm470, %v465, %v306
        %v475 = vsel %vm470, %v466, %v310
        %v476 = vsel %vm470, %v467, %v314
        %v477 = vsel %vm470, %v468, %v318
        %v478 = vsel %vm470, %v469, %v322
        %vm479 = vcmask 523264
        %v480 = vsel %vm479, %v471, %v326
        %v481 = vsel %vm479, %v472, %v330
        %v482 = vsel %vm479, %v473, %v334
        %v483 = vsel %vm479, %v474, %v338
        %v484 = vsel %vm479, %v475, %v342
        %v485 = vsel %vm479, %v476, %v346
        %v486 = vsel %vm479, %v477, %v350
        %v487 = vsel %vm479, %v478, %v354
        %vm488 = vcmask 654336
        %v489 = vsel %vm488, %v480, %v358
        %v490 = vsel %vm488, %v481, %v362
        %v491 = vsel %vm488, %v482, %v366
        %v492 = vsel %vm488, %v483, %v370
        %v493 = vsel %vm488, %v484, %v374
        %v494 = vsel %vm488, %v485, %v378
        %v495 = vsel %vm488, %v486, %v382
        %v496 = vsel %vm488, %v487, %v386
        %vm497 = vcmask 785408
        %v498 = vsel %vm497, %v489, %v390
        %v499 = vsel %vm497, %v490, %v394
        %v500 = vsel %vm497, %v491, %v398
        %v501 = vsel %vm497, %v492, %v402
        %v502 = vsel %vm497, %v493, %v406
        %v503 = vsel %vm497, %v494, %v410
        %v504 = vsel %vm497, %v495, %v414
        %v505 = vsel %vm497, %v496, %v418
        %vm506 = vcmask 916480
        %v507 = vsel %vm506, %v498, %v422
        %v508 = vsel %vm506, %v499, %v426
        %v509 = vsel %vm506, %v500, %v430
        %v510 = vsel %vm506, %v501, %v434
        %v511 = vsel %vm506, %v502, %v438
        %v512 = vsel %vm506, %v503, %v442
        %v513 = vsel %vm506, %v504, %v446
        %v514 = vsel %vm506, %v505, %v450
        %v515 = vld [vmem:[%s2] sm:$0x1]
        %v516 = vrcp.pop %v507
        %v517 = vrcp.pop %v508
        %v518 = vrcp.pop %v509
        %v519 = vrcp.pop %v510
        %v520 = vrcp.pop %v511
        %v521 = vrcp.pop %v512
        %v522 = vrcp.pop %v513
        %v523 = vrcp.pop %v514
        %v524 = vmul.f32 %v507, %v516
        %v525 = vmul.f32 %v508, %v517
        %v526 = vmul.f32 %v509, %v518
        %v527 = vmul.f32 %v510, %v519
        %v528 = vmul.f32 %v511, %v520
        %v529 = vmul.f32 %v512, %v521
        %v530 = vmul.f32 %v513, %v522
        %v531 = vmul.f32 %v514, %v523
        %v532 = vsub.f32 2.0, %v524
        %v533 = vsub.f32 2.0, %v525
        %v534 = vsub.f32 2.0, %v526
        %v535 = vsub.f32 2.0, %v527
        %v536 = vsub.f32 2.0, %v528
        %v537 = vsub.f32 2.0, %v529
        %v538 = vsub.f32 2.0, %v530
        %v539 = vsub.f32 2.0, %v531
        %v540 = vmul.f32 %v516, %v532
        %v541 = vmul.f32 %v517, %v533
        %v542 = vmul.f32 %v518, %v534
        %v543 = vmul.f32 %v519, %v535
        %v544 = vmul.f32 %v520, %v536
        %v545 = vmul.f32 %v521, %v537
        %v546 = vmul.f32 %v522, %v538
        %v547 = vmul.f32 %v523, %v539
        %v548 = vmul.f32 %v507, %v507
        %v549 = vmul.f32 %v508, %v508
        %v550 = vmul.f32 %v509, %v509
        %v551 = vmul.f32 %v510, %v510
        %v552 = vmul.f32 %v511, %v511
        %v553 = vmul.f32 %v512, %v512
        %v554 = vmul.f32 %v513, %v513
        %v555 = vmul.f32 %v514, %v514
        %v556 = vmul.f32 %v548, %v548
        %v557 = vmul.f32 %v549, %v549
        %v558 = vmul.f32 %v550, %v550
        %v559 = vmul.f32 %v551, %v551
        %v560 = vmul.f32 %v552, %v552
        %v561 = vmul.f32 %v553, %v553
        %v562 = vmul.f32 %v554, %v554
        %v563 = vmul.f32 %v555, %v555
        %v564 = vmul.f32 %v507, %v556
        %v565 = vmul.f32 %v508, %v557
        %v566 = vmul.f32 %v509, %v558
        %v567 = vmul.f32 %v510, %v559
        %v568 = vmul.f32 %v511, %v560
        %v569 = vmul.f32 %v512, %v561
        %v570 = vmul.f32 %v513, %v562
        %v571 = vmul.f32 %v514, %v563
        %v572 = vmul.f32 %v507, -15.0
        %v573 = vmul.f32 %v508, -15.0
        %v574 = vmul.f32 %v509, -15.0
        %v575 = vmul.f32 %v510, -15.0
        %v576 = vmul.f32 %v511, -15.0
        %v577 = vmul.f32 %v512, -15.0
        %v578 = vmul.f32 %v513, -15.0
        %v579 = vmul.f32 %v514, -15.0
        %v580 = vadd.f32 %v572, 35.0
        %v581 = vadd.f32 %v573, 35.0
        %v582 = vadd.f32 %v574, 35.0
        %v583 = vadd.f32 %v575, 35.0
        %v584 = vadd.f32 %v576, 35.0
        %v585 = vadd.f32 %v577, 35.0
        %v586 = vadd.f32 %v578, 35.0
        %v587 = vadd.f32 %v579, 35.0
        %v588 = vmul.f32 %v507, %v580
        %v589 = vmul.f32 %v508, %v581
        %v590 = vmul.f32 %v509, %v582
        %v591 = vmul.f32 %v510, %v583
        %v592 = vmul.f32 %v511, %v584
        %v593 = vmul.f32 %v512, %v585
        %v594 = vmul.f32 %v513, %v586
        %v595 = vmul.f32 %v514, %v587
        %v596 = vadd.f32 %v588, -21.0
        %v597 = vadd.f32 %v589, -21.0
        %v598 = vadd.f32 %v590, -21.0
        %v599 = vadd.f32 %v591, -21.0
        %v600 = vadd.f32 %v592, -21.0
        %v601 = vadd.f32 %v593, -21.0
        %v602 = vadd.f32 %v594, -21.0
        %v603 = vadd.f32 %v595, -21.0
        %v604 = vmul.f32 %v564, %v596
        %v605 = vmul.f32 %v565, %v597
        %v606 = vmul.f32 %v566, %v598
        %v607 = vmul.f32 %v567, %v599
        %v608 = vmul.f32 %v568, %v600
        %v609 = vmul.f32 %v569, %v601
        %v610 = vmul.f32 %v570, %v602
        %v611 = vmul.f32 %v571, %v603
        %v612 = vadd.f32 %v540, %v604
        %v613 = vadd.f32 %v541, %v605
        %v614 = vadd.f32 %v542, %v606
        %v615 = vadd.f32 %v543, %v607
        %v616 = vadd.f32 %v544, %v608
        %v617 = vadd.f32 %v545, %v609
        %v618 = vadd.f32 %v546, %v610
        %v619 = vadd.f32 %v547, %v611
        %vm620 = vcmp.lt.f32.partialorder %v507, 1.0
        %vm621 = vcmp.lt.f32.partialorder %v508, 1.0
        %vm622 = vcmp.lt.f32.partialorder %v509, 1.0
        %vm623 = vcmp.lt.f32.partialorder %v510, 1.0
        %vm624 = vcmp.lt.f32.partialorder %v511, 1.0
        %vm625 = vcmp.lt.f32.partialorder %v512, 1.0
        %vm626 = vcmp.lt.f32.partialorder %v513, 1.0
        %vm627 = vcmp.lt.f32.partialorder %v514, 1.0
        %v628 = vsel %vm620, %v612, 0.0
        %v629 = vsel %vm621, %v613, 0.0
        %v630 = vsel %vm622, %v614, 0.0
        %v631 = vsel %vm623, %v615, 0.0
        %v632 = vsel %vm624, %v616, 0.0
        %v633 = vsel %vm625, %v617, 0.0
        %v634 = vsel %vm626, %v618, 0.0
        %v635 = vsel %vm627, %v619, 0.0
        %v637 = vlaneseq
        %v638 = vshrl.u32 %v637, 7
        %v639 = vsub.s32 0, %v638
        %v640 = vrot.slane %v515, %v639
        %v642 = vmul.f32 %v640, %v507
        %v643 = vmul.f32 %v640, %v508
        %v644 = vmul.f32 %v640, %v509
        %v645 = vmul.f32 %v640, %v510
        %v646 = vmul.f32 %v640, %v511
        %v647 = vmul.f32 %v640, %v512
        %v648 = vmul.f32 %v640, %v513
        %v649 = vmul.f32 %v640, %v514
        %v650 = vand.u32 2147483647, %v642
        %vm651 = vcmp.le.f32.partialorder %v650, 0.7853982
        %vm652 = vcmp.lt.s32.totalorder %v642, 0
        %v653 = vand.u32 %v642, 2139095040
        %v654 = vshrl.u32 %v653, 23
        %v655 = vsub.s32 %v654, 127
        %v656 = vand.u32 2147483647, %v642
        %v657 = vand.u32 %v656, 8388607
        %v658 = vor.u32 %v657, 8388608
        %v659 = vsub.s32 0, %v658
        %v660 = vadd.s32 %v655, 1
        %vm661 = vcmp.gt.s32.totalorder %v660, 0
        %v662 = vsel %vm661, %v660, 0
        %v663 = vshrl.u32 %v662, 5
        %v664 = vand.u32 %v662, 31
        %v665 = vsub.s32 32, %v664
        %v666 = vshrl.u32 683565275, %v665
        %v667 = vshll.u32 683565275, %v664
        %v668 = vshrl.u32 2475754826, %v665
        %v669 = vor.u32 %v667, %v668
        %v670 = vshll.u32 2475754826, %v664
        %v671 = vshrl.u32 2131351028, %v665
        %v672 = vor.u32 %v670, %v671
        %v673 = vshll.u32 2131351028, %v664
        %v674 = vshrl.u32 2102212464, %v665
        %v675 = vor.u32 %v673, %v674
        %v676 = vshll.u32 2102212464, %v664
        %v677 = vshrl.u32 920167782, %v665
        %v678 = vor.u32 %v676, %v677
        %v679 = vshll.u32 920167782, %v664
        %v680 = vshrl.u32 1326507024, %v665
        %v681 = vor.u32 %v679, %v680
        %vm682 = vcmp.lt.s32.totalorder %v663, 1
        %vm683 = vcmp.lt.s32.totalorder %v663, 2
        %vm684 = vcmp.lt.s32.totalorder %v663, 3
        %vm685 = vcmp.lt.s32.totalorder %v663, 4
        %v686 = vsel %vm682, %v666, %v669
        %v687 = vsel %vm685, %v675, 2102212464
        %v688 = vsel %vm684, %v672, %v687
        %v689 = vsel %vm683, %v686, %v688
        %v690 = vsel %vm682, %v669, %v672
        %v691 = vsel %vm685, %v678, 920167782
        %v692 = vsel %vm684, %v675, %v691
        %v693 = vsel %vm683, %v690, %v692
        %v694 = vsel %vm682, %v672, %v675
        %v695 = vsel %vm685, %v681, 1326507024
        %v696 = vsel %vm684, %v678, %v695
        %v697 = vsel %vm683, %v694, %v696
        %v698 = vshll.u32 %v658, 8
        %v699 = vmul.u32.u64.compose %v698, %v697
        %v700 = vextract.low.u32 %v699
        %v701 = vextract.high.u32 %v699
        %v702 = vmul.u32.u64.compose %v698, %v693
        %v703 = vextract.low.u32 %v702
        %v704 = vextract.high.u32 %v702
        %v705 = vmul.u32 %v698, %v689
        %v706 = vadd.s32 %v701, %v703
        %vm707 = vc.u32 %v701, %v703
        %v708 = vadd.s32 %v704, 1
        %v709 = vsel %vm707, %v708, %v704
        %v710 = vadd.s32 %v705, %v709
        %v711 = vadd.s32 %v710, 536870912
        %v712 = vshrl.u32 %v711, 30
        %v713 = vshll.u32 %v712, 30
        %v714 = vsub.s32 %v710, %v713
        %vm715 = vcmp.lt.s32.totalorder %v714, 0
        %v716 = vsub.s32 0, %v714
        %v717 = vsel %vm715, %v716, %v714
        %v718 = vclz %v717
        %v719 = vsub.s32 %v718, 2
        %vm720 = vcmp.gt.s32.totalorder 0, %v719
        %v721 = vsel %vm720, 0, %v719
        %v722 = vsub.s32 32, %v721
        %v723 = vshll.u32 %v714, %v721
        %v724 = vshrl.u32 %v706, %v722
        %v725 = vor.u32 %v723, %v724
        %v726 = vsub.s32 4294967266, %v721
        %v727 = vadd.s32 %v726, 127
        %v728 = vshll.u32 %v727, 23
        %v729 = vor.u32 4788187, %v728
        %v730 = vand.u32 2147483647, %v729
        %v732 = vcvt.s32.f32 %v725
        %v733 = vmul.f32 %v732, %v730
        %v734 = vxor.u32 %v733, 2147483648
        %v735 = vsel %vm652, %v734, %v733
        %v736 = vsub.s32 4, %v712
        %v737 = vsel %vm652, %v736, %v712
        %v738 = vsel %vm651, %v642, %v735
        %v739 = vsel %vm651, 0, %v737
        %v740 = vcosq.f32.pop %v738
        %v741 = vsinq.f32.pop %v738
        %vm742 = vweird.f32 %v642
        %v743 = vadd.s32 %v739, 3
        %v744 = vand.u32 %v743, 3
        %vm745 = vcmp.lt.s32.totalorder %v744, 2
        %vm746 = vcmp.eq.s32.totalorder %v744, 0
        %v747 = vxor.u32 %v741, 2147483648
        %v748 = vsel %vm746, %v740, %v747
        %vm749 = vcmp.eq.s32.totalorder %v744, 2
        %v750 = vxor.u32 %v740, 2147483648
        %v751 = vsel %vm749, %v750, %v741
        %v752 = vsel %vm745, %v748, %v751
        %v753 = vsel %vm742, nan, %v752
        %v754 = vand.u32 2147483647, %v643
        %vm755 = vcmp.le.f32.partialorder %v754, 0.7853982
        %vm756 = vcmp.lt.s32.totalorder %v643, 0
        %v757 = vand.u32 %v643, 2139095040
        %v758 = vshrl.u32 %v757, 23
        %v759 = vsub.s32 %v758, 127
        %v760 = vand.u32 2147483647, %v643
        %v761 = vand.u32 %v760, 8388607
        %v762 = vor.u32 %v761, 8388608
        %v763 = vsub.s32 0, %v762
        %v764 = vadd.s32 %v759, 1
        %vm765 = vcmp.gt.s32.totalorder %v764, 0
        %v766 = vsel %vm765, %v764, 0
        %v767 = vshrl.u32 %v766, 5
        %v768 = vand.u32 %v766, 31
        %v769 = vsub.s32 32, %v768
        %v770 = vshrl.u32 683565275, %v769
        %v771 = vshll.u32 683565275, %v768
        %v772 = vshrl.u32 2475754826, %v769
        %v773 = vor.u32 %v771, %v772
        %v774 = vshll.u32 2475754826, %v768
        %v775 = vshrl.u32 2131351028, %v769
        %v776 = vor.u32 %v774, %v775
        %v777 = vshll.u32 2131351028, %v768
        %v778 = vshrl.u32 2102212464, %v769
        %v779 = vor.u32 %v777, %v778
        %v780 = vshll.u32 2102212464, %v768
        %v781 = vshrl.u32 920167782, %v769
        %v782 = vor.u32 %v780, %v781
        %v783 = vshll.u32 920167782, %v768
        %v784 = vshrl.u32 1326507024, %v769
        %v785 = vor.u32 %v783, %v784
        %vm786 = vcmp.lt.s32.totalorder %v767, 1
        %vm787 = vcmp.lt.s32.totalorder %v767, 2
        %vm788 = vcmp.lt.s32.totalorder %v767, 3
        %vm789 = vcmp.lt.s32.totalorder %v767, 4
        %v790 = vsel %vm786, %v770, %v773
        %v791 = vsel %vm789, %v779, 2102212464
        %v792 = vsel %vm788, %v776, %v791
        %v793 = vsel %vm787, %v790, %v792
        %v794 = vsel %vm786, %v773, %v776
        %v795 = vsel %vm789, %v782, 920167782
        %v796 = vsel %vm788, %v779, %v795
        %v797 = vsel %vm787, %v794, %v796
        %v798 = vsel %vm786, %v776, %v779
        %v799 = vsel %vm789, %v785, 1326507024
        %v800 = vsel %vm788, %v782, %v799
        %v801 = vsel %vm787, %v798, %v800
        %v802 = vshll.u32 %v762, 8
        %v803 = vmul.u32.u64.compose %v802, %v801
        %v804 = vextract.low.u32 %v803
        %v805 = vextract.high.u32 %v803
        %v806 = vmul.u32.u64.compose %v802, %v797
        %v807 = vextract.low.u32 %v806
        %v808 = vextract.high.u32 %v806
        %v809 = vmul.u32 %v802, %v793
        %v810 = vadd.s32 %v805, %v807
        %vm811 = vc.u32 %v805, %v807
        %v812 = vadd.s32 %v808, 1
        %v813 = vsel %vm811, %v812, %v808
        %v814 = vadd.s32 %v809, %v813
        %v815 = vadd.s32 %v814, 536870912
        %v816 = vshrl.u32 %v815, 30
        %v817 = vshll.u32 %v816, 30
        %v818 = vsub.s32 %v814, %v817
        %vm819 = vcmp.lt.s32.totalorder %v818, 0
        %v820 = vsub.s32 0, %v818
        %v821 = vsel %vm819, %v820, %v818
        %v822 = vclz %v821
        %v823 = vsub.s32 %v822, 2
        %vm824 = vcmp.gt.s32.totalorder 0, %v823
        %v825 = vsel %vm824, 0, %v823
        %v826 = vsub.s32 32, %v825
        %v827 = vshll.u32 %v818, %v825
        %v828 = vshrl.u32 %v810, %v826
        %v829 = vor.u32 %v827, %v828
        %v830 = vsub.s32 4294967266, %v825
        %v831 = vadd.s32 %v830, 127
        %v832 = vshll.u32 %v831, 23
        %v833 = vor.u32 4788187, %v832
        %v834 = vand.u32 2147483647, %v833
        %v836 = vcvt.s32.f32 %v829
        %v837 = vmul.f32 %v836, %v834
        %v838 = vxor.u32 %v837, 2147483648
        %v839 = vsel %vm756, %v838, %v837
        %v840 = vsub.s32 4, %v816
        %v841 = vsel %vm756, %v840, %v816
        %v842 = vsel %vm755, %v643, %v839
        %v843 = vsel %vm755, 0, %v841
        %v844 = vcosq.f32.pop %v842
        %v845 = vsinq.f32.pop %v842
        %vm846 = vweird.f32 %v643
        %v847 = vadd.s32 %v843, 3
        %v848 = vand.u32 %v847, 3
        %vm849 = vcmp.lt.s32.totalorder %v848, 2
        %vm850 = vcmp.eq.s32.totalorder %v848, 0
        %v851 = vxor.u32 %v845, 2147483648
        %v852 = vsel %vm850, %v844, %v851
        %vm853 = vcmp.eq.s32.totalorder %v848, 2
        %v854 = vxor.u32 %v844, 2147483648
        %v855 = vsel %vm853, %v854, %v845
        %v856 = vsel %vm849, %v852, %v855
        %v857 = vsel %vm846, nan, %v856
        %v858 = vand.u32 2147483647, %v644
        %vm859 = vcmp.le.f32.partialorder %v858, 0.7853982
        %vm860 = vcmp.lt.s32.totalorder %v644, 0
        %v861 = vand.u32 %v644, 2139095040
        %v862 = vshrl.u32 %v861, 23
        %v863 = vsub.s32 %v862, 127
        %v864 = vand.u32 2147483647, %v644
        %v865 = vand.u32 %v864, 8388607
        %v866 = vor.u32 %v865, 8388608
        %v867 = vsub.s32 0, %v866
        %v868 = vadd.s32 %v863, 1
        %vm869 = vcmp.gt.s32.totalorder %v868, 0
        %v870 = vsel %vm869, %v868, 0
        %v871 = vshrl.u32 %v870, 5
        %v872 = vand.u32 %v870, 31
        %v873 = vsub.s32 32, %v872
        %v874 = vshrl.u32 683565275, %v873
        %v875 = vshll.u32 683565275, %v872
        %v876 = vshrl.u32 2475754826, %v873
        %v877 = vor.u32 %v875, %v876
        %v878 = vshll.u32 2475754826, %v872
        %v879 = vshrl.u32 2131351028, %v873
        %v880 = vor.u32 %v878, %v879
        %v881 = vshll.u32 2131351028, %v872
        %v882 = vshrl.u32 2102212464, %v873
        %v883 = vor.u32 %v881, %v882
        %v884 = vshll.u32 2102212464, %v872
        %v885 = vshrl.u32 920167782, %v873
        %v886 = vor.u32 %v884, %v885
        %v887 = vshll.u32 920167782, %v872
        %v888 = vshrl.u32 1326507024, %v873
        %v889 = vor.u32 %v887, %v888
        %vm890 = vcmp.lt.s32.totalorder %v871, 1
        %vm891 = vcmp.lt.s32.totalorder %v871, 2
        %vm892 = vcmp.lt.s32.totalorder %v871, 3
        %vm893 = vcmp.lt.s32.totalorder %v871, 4
        %v894 = vsel %vm890, %v874, %v877
        %v895 = vsel %vm893, %v883, 2102212464
        %v896 = vsel %vm892, %v880, %v895
        %v897 = vsel %vm891, %v894, %v896
        %v898 = vsel %vm890, %v877, %v880
        %v899 = vsel %vm893, %v886, 920167782
        %v900 = vsel %vm892, %v883, %v899
        %v901 = vsel %vm891, %v898, %v900
        %v902 = vsel %vm890, %v880, %v883
        %v903 = vsel %vm893, %v889, 1326507024
        %v904 = vsel %vm892, %v886, %v903
        %v905 = vsel %vm891, %v902, %v904
        %v906 = vshll.u32 %v866, 8
        %v907 = vmul.u32.u64.compose %v906, %v905
        %v908 = vextract.low.u32 %v907
        %v909 = vextract.high.u32 %v907
        %v910 = vmul.u32.u64.compose %v906, %v901
        %v911 = vextract.low.u32 %v910
        %v912 = vextract.high.u32 %v910
        %v913 = vmul.u32 %v906, %v897
        %v914 = vadd.s32 %v909, %v911
        %vm915 = vc.u32 %v909, %v911
        %v916 = vadd.s32 %v912, 1
        %v917 = vsel %vm915, %v916, %v912
        %v918 = vadd.s32 %v913, %v917
        %v919 = vadd.s32 %v918, 536870912
        %v920 = vshrl.u32 %v919, 30
        %v921 = vshll.u32 %v920, 30
        %v922 = vsub.s32 %v918, %v921
        %vm923 = vcmp.lt.s32.totalorder %v922, 0
        %v924 = vsub.s32 0, %v922
        %v925 = vsel %vm923, %v924, %v922
        %v926 = vclz %v925
        %v927 = vsub.s32 %v926, 2
        %vm928 = vcmp.gt.s32.totalorder 0, %v927
        %v929 = vsel %vm928, 0, %v927
        %v930 = vsub.s32 32, %v929
        %v931 = vshll.u32 %v922, %v929
        %v932 = vshrl.u32 %v914, %v930
        %v933 = vor.u32 %v931, %v932
        %v934 = vsub.s32 4294967266, %v929
        %v935 = vadd.s32 %v934, 127
        %v936 = vshll.u32 %v935, 23
        %v937 = vor.u32 4788187, %v936
        %v938 = vand.u32 2147483647, %v937
        %v940 = vcvt.s32.f32 %v933
        %v941 = vmul.f32 %v940, %v938
        %v942 = vxor.u32 %v941, 2147483648
        %v943 = vsel %vm860, %v942, %v941
        %v944 = vsub.s32 4, %v920
        %v945 = vsel %vm860, %v944, %v920
        %v946 = vsel %vm859, %v644, %v943
        %v947 = vsel %vm859, 0, %v945
        %v948 = vcosq.f32.pop %v946
        %v949 = vsinq.f32.pop %v946
        %vm950 = vweird.f32 %v644
        %v951 = vadd.s32 %v947, 3
        %v952 = vand.u32 %v951, 3
        %vm953 = vcmp.lt.s32.totalorder %v952, 2
        %vm954 = vcmp.eq.s32.totalorder %v952, 0
        %v955 = vxor.u32 %v949, 2147483648
        %v956 = vsel %vm954, %v948, %v955
        %vm957 = vcmp.eq.s32.totalorder %v952, 2
        %v958 = vxor.u32 %v948, 2147483648
        %v959 = vsel %vm957, %v958, %v949
        %v960 = vsel %vm953, %v956, %v959
        %v961 = vsel %vm950, nan, %v960
        %v962 = vand.u32 2147483647, %v645
        %vm963 = vcmp.le.f32.partialorder %v962, 0.7853982
        %vm964 = vcmp.lt.s32.totalorder %v645, 0
        %v965 = vand.u32 %v645, 2139095040
        %v966 = vshrl.u32 %v965, 23
        %v967 = vsub.s32 %v966, 127
        %v968 = vand.u32 2147483647, %v645
        %v969 = vand.u32 %v968, 8388607
        %v970 = vor.u32 %v969, 8388608
        %v971 = vsub.s32 0, %v970
        %v972 = vadd.s32 %v967, 1
        %vm973 = vcmp.gt.s32.totalorder %v972, 0
        %v974 = vsel %vm973, %v972, 0
        %v975 = vshrl.u32 %v974, 5
        %v976 = vand.u32 %v974, 31
        %v977 = vsub.s32 32, %v976
        %v978 = vshrl.u32 683565275, %v977
        %v979 = vshll.u32 683565275, %v976
        %v980 = vshrl.u32 2475754826, %v977
        %v981 = vor.u32 %v979, %v980
        %v982 = vshll.u32 2475754826, %v976
        %v983 = vshrl.u32 2131351028, %v977
        %v984 = vor.u32 %v982, %v983
        %v985 = vshll.u32 2131351028, %v976
        %v986 = vshrl.u32 2102212464, %v977
        %v987 = vor.u32 %v985, %v986
        %v988 = vshll.u32 2102212464, %v976
        %v989 = vshrl.u32 920167782, %v977
        %v990 = vor.u32 %v988, %v989
        %v991 = vshll.u32 920167782, %v976
        %v992 = vshrl.u32 1326507024, %v977
        %v993 = vor.u32 %v991, %v992
        %vm994 = vcmp.lt.s32.totalorder %v975, 1
        %vm995 = vcmp.lt.s32.totalorder %v975, 2
        %vm996 = vcmp.lt.s32.totalorder %v975, 3
        %vm997 = vcmp.lt.s32.totalorder %v975, 4
        %v998 = vsel %vm994, %v978, %v981
        %v999 = vsel %vm997, %v987, 2102212464
        %v1000 = vsel %vm996, %v984, %v999
        %v1001 = vsel %vm995, %v998, %v1000
        %v1002 = vsel %vm994, %v981, %v984
        %v1003 = vsel %vm997, %v990, 920167782
        %v1004 = vsel %vm996, %v987, %v1003
        %v1005 = vsel %vm995, %v1002, %v1004
        %v1006 = vsel %vm994, %v984, %v987
        %v1007 = vsel %vm997, %v993, 1326507024
        %v1008 = vsel %vm996, %v990, %v1007
        %v1009 = vsel %vm995, %v1006, %v1008
        %v1010 = vshll.u32 %v970, 8
        %v1011 = vmul.u32.u64.compose %v1010, %v1009
        %v1012 = vextract.low.u32 %v1011
        %v1013 = vextract.high.u32 %v1011
        %v1014 = vmul.u32.u64.compose %v1010, %v1005
        %v1015 = vextract.low.u32 %v1014
        %v1016 = vextract.high.u32 %v1014
        %v1017 = vmul.u32 %v1010, %v1001
        %v1018 = vadd.s32 %v1013, %v1015
        %vm1019 = vc.u32 %v1013, %v1015
        %v1020 = vadd.s32 %v1016, 1
        %v1021 = vsel %vm1019, %v1020, %v1016
        %v1022 = vadd.s32 %v1017, %v1021
        %v1023 = vadd.s32 %v1022, 536870912
        %v1024 = vshrl.u32 %v1023, 30
        %v1025 = vshll.u32 %v1024, 30
        %v1026 = vsub.s32 %v1022, %v1025
        %vm1027 = vcmp.lt.s32.totalorder %v1026, 0
        %v1028 = vsub.s32 0, %v1026
        %v1029 = vsel %vm1027, %v1028, %v1026
        %v1030 = vclz %v1029
        %v1031 = vsub.s32 %v1030, 2
        %vm1032 = vcmp.gt.s32.totalorder 0, %v1031
        %v1033 = vsel %vm1032, 0, %v1031
        %v1034 = vsub.s32 32, %v1033
        %v1035 = vshll.u32 %v1026, %v1033
        %v1036 = vshrl.u32 %v1018, %v1034
        %v1037 = vor.u32 %v1035, %v1036
        %v1038 = vsub.s32 4294967266, %v1033
        %v1039 = vadd.s32 %v1038, 127
        %v1040 = vshll.u32 %v1039, 23
        %v1041 = vor.u32 4788187, %v1040
        %v1042 = vand.u32 2147483647, %v1041
        %v1044 = vcvt.s32.f32 %v1037
        %v1045 = vmul.f32 %v1044, %v1042
        %v1046 = vxor.u32 %v1045, 2147483648
        %v1047 = vsel %vm964, %v1046, %v1045
        %v1048 = vsub.s32 4, %v1024
        %v1049 = vsel %vm964, %v1048, %v1024
        %v1050 = vsel %vm963, %v645, %v1047
        %v1051 = vsel %vm963, 0, %v1049
        %v1052 = vcosq.f32.pop %v1050
        %v1053 = vsinq.f32.pop %v1050
        %vm1054 = vweird.f32 %v645
        %v1055 = vadd.s32 %v1051, 3
        %v1056 = vand.u32 %v1055, 3
        %vm1057 = vcmp.lt.s32.totalorder %v1056, 2
        %vm1058 = vcmp.eq.s32.totalorder %v1056, 0
        %v1059 = vxor.u32 %v1053, 2147483648
        %v1060 = vsel %vm1058, %v1052, %v1059
        %vm1061 = vcmp.eq.s32.totalorder %v1056, 2
        %v1062 = vxor.u32 %v1052, 2147483648
        %v1063 = vsel %vm1061, %v1062, %v1053
        %v1064 = vsel %vm1057, %v1060, %v1063
        %v1065 = vsel %vm1054, nan, %v1064
        %v1066 = vand.u32 2147483647, %v646
        %vm1067 = vcmp.le.f32.partialorder %v1066, 0.7853982
        %vm1068 = vcmp.lt.s32.totalorder %v646, 0
        %v1069 = vand.u32 %v646, 2139095040
        %v1070 = vshrl.u32 %v1069, 23
        %v1071 = vsub.s32 %v1070, 127
        %v1072 = vand.u32 2147483647, %v646
        %v1073 = vand.u32 %v1072, 8388607
        %v1074 = vor.u32 %v1073, 8388608
        %v1075 = vsub.s32 0, %v1074
        %v1076 = vadd.s32 %v1071, 1
        %vm1077 = vcmp.gt.s32.totalorder %v1076, 0
        %v1078 = vsel %vm1077, %v1076, 0
        %v1079 = vshrl.u32 %v1078, 5
        %v1080 = vand.u32 %v1078, 31
        %v1081 = vsub.s32 32, %v1080
        %v1082 = vshrl.u32 683565275, %v1081
        %v1083 = vshll.u32 683565275, %v1080
        %v1084 = vshrl.u32 2475754826, %v1081
        %v1085 = vor.u32 %v1083, %v1084
        %v1086 = vshll.u32 2475754826, %v1080
        %v1087 = vshrl.u32 2131351028, %v1081
        %v1088 = vor.u32 %v1086, %v1087
        %v1089 = vshll.u32 2131351028, %v1080
        %v1090 = vshrl.u32 2102212464, %v1081
        %v1091 = vor.u32 %v1089, %v1090
        %v1092 = vshll.u32 2102212464, %v1080
        %v1093 = vshrl.u32 920167782, %v1081
        %v1094 = vor.u32 %v1092, %v1093
        %v1095 = vshll.u32 920167782, %v1080
        %v1096 = vshrl.u32 1326507024, %v1081
        %v1097 = vor.u32 %v1095, %v1096
        %vm1098 = vcmp.lt.s32.totalorder %v1079, 1
        %vm1099 = vcmp.lt.s32.totalorder %v1079, 2
        %vm1100 = vcmp.lt.s32.totalorder %v1079, 3
        %vm1101 = vcmp.lt.s32.totalorder %v1079, 4
        %v1102 = vsel %vm1098, %v1082, %v1085
        %v1103 = vsel %vm1101, %v1091, 2102212464
        %v1104 = vsel %vm1100, %v1088, %v1103
        %v1105 = vsel %vm1099, %v1102, %v1104
        %v1106 = vsel %vm1098, %v1085, %v1088
        %v1107 = vsel %vm1101, %v1094, 920167782
        %v1108 = vsel %vm1100, %v1091, %v1107
        %v1109 = vsel %vm1099, %v1106, %v1108
        %v1110 = vsel %vm1098, %v1088, %v1091
        %v1111 = vsel %vm1101, %v1097, 1326507024
        %v1112 = vsel %vm1100, %v1094, %v1111
        %v1113 = vsel %vm1099, %v1110, %v1112
        %v1114 = vshll.u32 %v1074, 8
        %v1115 = vmul.u32.u64.compose %v1114, %v1113
        %v1116 = vextract.low.u32 %v1115
        %v1117 = vextract.high.u32 %v1115
        %v1118 = vmul.u32.u64.compose %v1114, %v1109
        %v1119 = vextract.low.u32 %v1118
        %v1120 = vextract.high.u32 %v1118
        %v1121 = vmul.u32 %v1114, %v1105
        %v1122 = vadd.s32 %v1117, %v1119
        %vm1123 = vc.u32 %v1117, %v1119
        %v1124 = vadd.s32 %v1120, 1
        %v1125 = vsel %vm1123, %v1124, %v1120
        %v1126 = vadd.s32 %v1121, %v1125
        %v1127 = vadd.s32 %v1126, 536870912
        %v1128 = vshrl.u32 %v1127, 30
        %v1129 = vshll.u32 %v1128, 30
        %v1130 = vsub.s32 %v1126, %v1129
        %vm1131 = vcmp.lt.s32.totalorder %v1130, 0
        %v1132 = vsub.s32 0, %v1130
        %v1133 = vsel %vm1131, %v1132, %v1130
        %v1134 = vclz %v1133
        %v1135 = vsub.s32 %v1134, 2
        %vm1136 = vcmp.gt.s32.totalorder 0, %v1135
        %v1137 = vsel %vm1136, 0, %v1135
        %v1138 = vsub.s32 32, %v1137
        %v1139 = vshll.u32 %v1130, %v1137
        %v1140 = vshrl.u32 %v1122, %v1138
        %v1141 = vor.u32 %v1139, %v1140
        %v1142 = vsub.s32 4294967266, %v1137
        %v1143 = vadd.s32 %v1142, 127
        %v1144 = vshll.u32 %v1143, 23
        %v1145 = vor.u32 4788187, %v1144
        %v1146 = vand.u32 2147483647, %v1145
        %v1148 = vcvt.s32.f32 %v1141
        %v1149 = vmul.f32 %v1148, %v1146
        %v1150 = vxor.u32 %v1149, 2147483648
        %v1151 = vsel %vm1068, %v1150, %v1149
        %v1152 = vsub.s32 4, %v1128
        %v1153 = vsel %vm1068, %v1152, %v1128
        %v1154 = vsel %vm1067, %v646, %v1151
        %v1155 = vsel %vm1067, 0, %v1153
        %v1156 = vcosq.f32.pop %v1154
        %v1157 = vsinq.f32.pop %v1154
        %vm1158 = vweird.f32 %v646
        %v1159 = vadd.s32 %v1155, 3
        %v1160 = vand.u32 %v1159, 3
        %vm1161 = vcmp.lt.s32.totalorder %v1160, 2
        %vm1162 = vcmp.eq.s32.totalorder %v1160, 0
        %v1163 = vxor.u32 %v1157, 2147483648
        %v1164 = vsel %vm1162, %v1156, %v1163
        %vm1165 = vcmp.eq.s32.totalorder %v1160, 2
        %v1166 = vxor.u32 %v1156, 2147483648
        %v1167 = vsel %vm1165, %v1166, %v1157
        %v1168 = vsel %vm1161, %v1164, %v1167
        %v1169 = vsel %vm1158, nan, %v1168
        %v1170 = vand.u32 2147483647, %v647
        %vm1171 = vcmp.le.f32.partialorder %v1170, 0.7853982
        %vm1172 = vcmp.lt.s32.totalorder %v647, 0
        %v1173 = vand.u32 %v647, 2139095040
        %v1174 = vshrl.u32 %v1173, 23
        %v1175 = vsub.s32 %v1174, 127
        %v1176 = vand.u32 2147483647, %v647
        %v1177 = vand.u32 %v1176, 8388607
        %v1178 = vor.u32 %v1177, 8388608
        %v1179 = vsub.s32 0, %v1178
        %v1180 = vadd.s32 %v1175, 1
        %vm1181 = vcmp.gt.s32.totalorder %v1180, 0
        %v1182 = vsel %vm1181, %v1180, 0
        %v1183 = vshrl.u32 %v1182, 5
        %v1184 = vand.u32 %v1182, 31
        %v1185 = vsub.s32 32, %v1184
        %v1186 = vshrl.u32 683565275, %v1185
        %v1187 = vshll.u32 683565275, %v1184
        %v1188 = vshrl.u32 2475754826, %v1185
        %v1189 = vor.u32 %v1187, %v1188
        %v1190 = vshll.u32 2475754826, %v1184
        %v1191 = vshrl.u32 2131351028, %v1185
        %v1192 = vor.u32 %v1190, %v1191
        %v1193 = vshll.u32 2131351028, %v1184
        %v1194 = vshrl.u32 2102212464, %v1185
        %v1195 = vor.u32 %v1193, %v1194
        %v1196 = vshll.u32 2102212464, %v1184
        %v1197 = vshrl.u32 920167782, %v1185
        %v1198 = vor.u32 %v1196, %v1197
        %v1199 = vshll.u32 920167782, %v1184
        %v1200 = vshrl.u32 1326507024, %v1185
        %v1201 = vor.u32 %v1199, %v1200
        %vm1202 = vcmp.lt.s32.totalorder %v1183, 1
        %vm1203 = vcmp.lt.s32.totalorder %v1183, 2
        %vm1204 = vcmp.lt.s32.totalorder %v1183, 3
        %vm1205 = vcmp.lt.s32.totalorder %v1183, 4
        %v1206 = vsel %vm1202, %v1186, %v1189
        %v1207 = vsel %vm1205, %v1195, 2102212464
        %v1208 = vsel %vm1204, %v1192, %v1207
        %v1209 = vsel %vm1203, %v1206, %v1208
        %v1210 = vsel %vm1202, %v1189, %v1192
        %v1211 = vsel %vm1205, %v1198, 920167782
        %v1212 = vsel %vm1204, %v1195, %v1211
        %v1213 = vsel %vm1203, %v1210, %v1212
        %v1214 = vsel %vm1202, %v1192, %v1195
        %v1215 = vsel %vm1205, %v1201, 1326507024
        %v1216 = vsel %vm1204, %v1198, %v1215
        %v1217 = vsel %vm1203, %v1214, %v1216
        %v1218 = vshll.u32 %v1178, 8
        %v1219 = vmul.u32.u64.compose %v1218, %v1217
        %v1220 = vextract.low.u32 %v1219
        %v1221 = vextract.high.u32 %v1219
        %v1222 = vmul.u32.u64.compose %v1218, %v1213
        %v1223 = vextract.low.u32 %v1222
        %v1224 = vextract.high.u32 %v1222
        %v1225 = vmul.u32 %v1218, %v1209
        %v1226 = vadd.s32 %v1221, %v1223
        %vm1227 = vc.u32 %v1221, %v1223
        %v1228 = vadd.s32 %v1224, 1
        %v1229 = vsel %vm1227, %v1228, %v1224
        %v1230 = vadd.s32 %v1225, %v1229
        %v1231 = vadd.s32 %v1230, 536870912
        %v1232 = vshrl.u32 %v1231, 30
        %v1233 = vshll.u32 %v1232, 30
        %v1234 = vsub.s32 %v1230, %v1233
        %vm1235 = vcmp.lt.s32.totalorder %v1234, 0
        %v1236 = vsub.s32 0, %v1234
        %v1237 = vsel %vm1235, %v1236, %v1234
        %v1238 = vclz %v1237
        %v1239 = vsub.s32 %v1238, 2
        %vm1240 = vcmp.gt.s32.totalorder 0, %v1239
        %v1241 = vsel %vm1240, 0, %v1239
        %v1242 = vsub.s32 32, %v1241
        %v1243 = vshll.u32 %v1234, %v1241
        %v1244 = vshrl.u32 %v1226, %v1242
        %v1245 = vor.u32 %v1243, %v1244
        %v1246 = vsub.s32 4294967266, %v1241
        %v1247 = vadd.s32 %v1246, 127
        %v1248 = vshll.u32 %v1247, 23
        %v1249 = vor.u32 4788187, %v1248
        %v1250 = vand.u32 2147483647, %v1249
        %v1252 = vcvt.s32.f32 %v1245
        %v1253 = vmul.f32 %v1252, %v1250
        %v1254 = vxor.u32 %v1253, 2147483648
        %v1255 = vsel %vm1172, %v1254, %v1253
        %v1256 = vsub.s32 4, %v1232
        %v1257 = vsel %vm1172, %v1256, %v1232
        %v1258 = vsel %vm1171, %v647, %v1255
        %v1259 = vsel %vm1171, 0, %v1257
        %v1260 = vcosq.f32.pop %v1258
        %v1261 = vsinq.f32.pop %v1258
        %vm1262 = vweird.f32 %v647
        %v1263 = vadd.s32 %v1259, 3
        %v1264 = vand.u32 %v1263, 3
        %vm1265 = vcmp.lt.s32.totalorder %v1264, 2
        %vm1266 = vcmp.eq.s32.totalorder %v1264, 0
        %v1267 = vxor.u32 %v1261, 2147483648
        %v1268 = vsel %vm1266, %v1260, %v1267
        %vm1269 = vcmp.eq.s32.totalorder %v1264, 2
        %v1270 = vxor.u32 %v1260, 2147483648
        %v1271 = vsel %vm1269, %v1270, %v1261
        %v1272 = vsel %vm1265, %v1268, %v1271
        %v1273 = vsel %vm1262, nan, %v1272
        %v1274 = vand.u32 2147483647, %v648
        %vm1275 = vcmp.le.f32.partialorder %v1274, 0.7853982
        %vm1276 = vcmp.lt.s32.totalorder %v648, 0
        %v1277 = vand.u32 %v648, 2139095040
        %v1278 = vshrl.u32 %v1277, 23
        %v1279 = vsub.s32 %v1278, 127
        %v1280 = vand.u32 2147483647, %v648
        %v1281 = vand.u32 %v1280, 8388607
        %v1282 = vor.u32 %v1281, 8388608
        %v1283 = vsub.s32 0, %v1282
        %v1284 = vadd.s32 %v1279, 1
        %vm1285 = vcmp.gt.s32.totalorder %v1284, 0
        %v1286 = vsel %vm1285, %v1284, 0
        %v1287 = vshrl.u32 %v1286, 5
        %v1288 = vand.u32 %v1286, 31
        %v1289 = vsub.s32 32, %v1288
        %v1290 = vshrl.u32 683565275, %v1289
        %v1291 = vshll.u32 683565275, %v1288
        %v1292 = vshrl.u32 2475754826, %v1289
        %v1293 = vor.u32 %v1291, %v1292
        %v1294 = vshll.u32 2475754826, %v1288
        %v1295 = vshrl.u32 2131351028, %v1289
        %v1296 = vor.u32 %v1294, %v1295
        %v1297 = vshll.u32 2131351028, %v1288
        %v1298 = vshrl.u32 2102212464, %v1289
        %v1299 = vor.u32 %v1297, %v1298
        %v1300 = vshll.u32 2102212464, %v1288
        %v1301 = vshrl.u32 920167782, %v1289
        %v1302 = vor.u32 %v1300, %v1301
        %v1303 = vshll.u32 920167782, %v1288
        %v1304 = vshrl.u32 1326507024, %v1289
        %v1305 = vor.u32 %v1303, %v1304
        %vm1306 = vcmp.lt.s32.totalorder %v1287, 1
        %vm1307 = vcmp.lt.s32.totalorder %v1287, 2
        %vm1308 = vcmp.lt.s32.totalorder %v1287, 3
        %vm1309 = vcmp.lt.s32.totalorder %v1287, 4
        %v1310 = vsel %vm1306, %v1290, %v1293
        %v1311 = vsel %vm1309, %v1299, 2102212464
        %v1312 = vsel %vm1308, %v1296, %v1311
        %v1313 = vsel %vm1307, %v1310, %v1312
        %v1314 = vsel %vm1306, %v1293, %v1296
        %v1315 = vsel %vm1309, %v1302, 920167782
        %v1316 = vsel %vm1308, %v1299, %v1315
        %v1317 = vsel %vm1307, %v1314, %v1316
        %v1318 = vsel %vm1306, %v1296, %v1299
        %v1319 = vsel %vm1309, %v1305, 1326507024
        %v1320 = vsel %vm1308, %v1302, %v1319
        %v1321 = vsel %vm1307, %v1318, %v1320
        %v1322 = vshll.u32 %v1282, 8
        %v1323 = vmul.u32.u64.compose %v1322, %v1321
        %v1324 = vextract.low.u32 %v1323
        %v1325 = vextract.high.u32 %v1323
        %v1326 = vmul.u32.u64.compose %v1322, %v1317
        %v1327 = vextract.low.u32 %v1326
        %v1328 = vextract.high.u32 %v1326
        %v1329 = vmul.u32 %v1322, %v1313
        %v1330 = vadd.s32 %v1325, %v1327
        %vm1331 = vc.u32 %v1325, %v1327
        %v1332 = vadd.s32 %v1328, 1
        %v1333 = vsel %vm1331, %v1332, %v1328
        %v1334 = vadd.s32 %v1329, %v1333
        %v1335 = vadd.s32 %v1334, 536870912
        %v1336 = vshrl.u32 %v1335, 30
        %v1337 = vshll.u32 %v1336, 30
        %v1338 = vsub.s32 %v1334, %v1337
        %vm1339 = vcmp.lt.s32.totalorder %v1338, 0
        %v1340 = vsub.s32 0, %v1338
        %v1341 = vsel %vm1339, %v1340, %v1338
        %v1342 = vclz %v1341
        %v1343 = vsub.s32 %v1342, 2
        %vm1344 = vcmp.gt.s32.totalorder 0, %v1343
        %v1345 = vsel %vm1344, 0, %v1343
        %v1346 = vsub.s32 32, %v1345
        %v1347 = vshll.u32 %v1338, %v1345
        %v1348 = vshrl.u32 %v1330, %v1346
        %v1349 = vor.u32 %v1347, %v1348
        %v1350 = vsub.s32 4294967266, %v1345
        %v1351 = vadd.s32 %v1350, 127
        %v1352 = vshll.u32 %v1351, 23
        %v1353 = vor.u32 4788187, %v1352
        %v1354 = vand.u32 2147483647, %v1353
        %v1356 = vcvt.s32.f32 %v1349
        %v1357 = vmul.f32 %v1356, %v1354
        %v1358 = vxor.u32 %v1357, 2147483648
        %v1359 = vsel %vm1276, %v1358, %v1357
        %v1360 = vsub.s32 4, %v1336
        %v1361 = vsel %vm1276, %v1360, %v1336
        %v1362 = vsel %vm1275, %v648, %v1359
        %v1363 = vsel %vm1275, 0, %v1361
        %v1364 = vcosq.f32.pop %v1362
        %v1365 = vsinq.f32.pop %v1362
        %vm1366 = vweird.f32 %v648
        %v1367 = vadd.s32 %v1363, 3
        %v1368 = vand.u32 %v1367, 3
        %vm1369 = vcmp.lt.s32.totalorder %v1368, 2
        %vm1370 = vcmp.eq.s32.totalorder %v1368, 0
        %v1371 = vxor.u32 %v1365, 2147483648
        %v1372 = vsel %vm1370, %v1364, %v1371
        %vm1373 = vcmp.eq.s32.totalorder %v1368, 2
        %v1374 = vxor.u32 %v1364, 2147483648
        %v1375 = vsel %vm1373, %v1374, %v1365
        %v1376 = vsel %vm1369, %v1372, %v1375
        %v1377 = vsel %vm1366, nan, %v1376
        %v1378 = vand.u32 2147483647, %v649
        %vm1379 = vcmp.le.f32.partialorder %v1378, 0.7853982
        %vm1380 = vcmp.lt.s32.totalorder %v649, 0
        %v1381 = vand.u32 %v649, 2139095040
        %v1382 = vshrl.u32 %v1381, 23
        %v1383 = vsub.s32 %v1382, 127
        %v1384 = vand.u32 2147483647, %v649
        %v1385 = vand.u32 %v1384, 8388607
        %v1386 = vor.u32 %v1385, 8388608
        %v1387 = vsub.s32 0, %v1386
        %v1388 = vadd.s32 %v1383, 1
        %vm1389 = vcmp.gt.s32.totalorder %v1388, 0
        %v1390 = vsel %vm1389, %v1388, 0
        %v1391 = vshrl.u32 %v1390, 5
        %v1392 = vand.u32 %v1390, 31
        %v1393 = vsub.s32 32, %v1392
        %v1394 = vshrl.u32 683565275, %v1393
        %v1395 = vshll.u32 683565275, %v1392
        %v1396 = vshrl.u32 2475754826, %v1393
        %v1397 = vor.u32 %v1395, %v1396
        %v1398 = vshll.u32 2475754826, %v1392
        %v1399 = vshrl.u32 2131351028, %v1393
        %v1400 = vor.u32 %v1398, %v1399
        %v1401 = vshll.u32 2131351028, %v1392
        %v1402 = vshrl.u32 2102212464, %v1393
        %v1403 = vor.u32 %v1401, %v1402
        %v1404 = vshll.u32 2102212464, %v1392
        %v1405 = vshrl.u32 920167782, %v1393
        %v1406 = vor.u32 %v1404, %v1405
        %v1407 = vshll.u32 920167782, %v1392
        %v1408 = vshrl.u32 1326507024, %v1393
        %v1409 = vor.u32 %v1407, %v1408
        %vm1410 = vcmp.lt.s32.totalorder %v1391, 1
        %vm1411 = vcmp.lt.s32.totalorder %v1391, 2
        %vm1412 = vcmp.lt.s32.totalorder %v1391, 3
        %vm1413 = vcmp.lt.s32.totalorder %v1391, 4
        %v1414 = vsel %vm1410, %v1394, %v1397
        %v1415 = vsel %vm1413, %v1403, 2102212464
        %v1416 = vsel %vm1412, %v1400, %v1415
        %v1417 = vsel %vm1411, %v1414, %v1416
        %v1418 = vsel %vm1410, %v1397, %v1400
        %v1419 = vsel %vm1413, %v1406, 920167782
        %v1420 = vsel %vm1412, %v1403, %v1419
        %v1421 = vsel %vm1411, %v1418, %v1420
        %v1422 = vsel %vm1410, %v1400, %v1403
        %v1423 = vsel %vm1413, %v1409, 1326507024
        %v1424 = vsel %vm1412, %v1406, %v1423
        %v1425 = vsel %vm1411, %v1422, %v1424
        %v1426 = vshll.u32 %v1386, 8
        %v1427 = vmul.u32.u64.compose %v1426, %v1425
        %v1428 = vextract.low.u32 %v1427
        %v1429 = vextract.high.u32 %v1427
        %v1430 = vmul.u32.u64.compose %v1426, %v1421
        %v1431 = vextract.low.u32 %v1430
        %v1432 = vextract.high.u32 %v1430
        %v1433 = vmul.u32 %v1426, %v1417
        %v1434 = vadd.s32 %v1429, %v1431
        %vm1435 = vc.u32 %v1429, %v1431
        %v1436 = vadd.s32 %v1432, 1
        %v1437 = vsel %vm1435, %v1436, %v1432
        %v1438 = vadd.s32 %v1433, %v1437
        %v1439 = vadd.s32 %v1438, 536870912
        %v1440 = vshrl.u32 %v1439, 30
        %v1441 = vshll.u32 %v1440, 30
        %v1442 = vsub.s32 %v1438, %v1441
        %vm1443 = vcmp.lt.s32.totalorder %v1442, 0
        %v1444 = vsub.s32 0, %v1442
        %v1445 = vsel %vm1443, %v1444, %v1442
        %v1446 = vclz %v1445
        %v1447 = vsub.s32 %v1446, 2
        %vm1448 = vcmp.gt.s32.totalorder 0, %v1447
        %v1449 = vsel %vm1448, 0, %v1447
        %v1450 = vsub.s32 32, %v1449
        %v1451 = vshll.u32 %v1442, %v1449
        %v1452 = vshrl.u32 %v1434, %v1450
        %v1453 = vor.u32 %v1451, %v1452
        %v1454 = vsub.s32 4294967266, %v1449
        %v1455 = vadd.s32 %v1454, 127
        %v1456 = vshll.u32 %v1455, 23
        %v1457 = vor.u32 4788187, %v1456
        %v1458 = vand.u32 2147483647, %v1457
        %v1460 = vcvt.s32.f32 %v1453
        %v1461 = vmul.f32 %v1460, %v1458
        %v1462 = vxor.u32 %v1461, 2147483648
        %v1463 = vsel %vm1380, %v1462, %v1461
        %v1464 = vsub.s32 4, %v1440
        %v1465 = vsel %vm1380, %v1464, %v1440
        %v1466 = vsel %vm1379, %v649, %v1463
        %v1467 = vsel %vm1379, 0, %v1465
        %v1468 = vcosq.f32.pop %v1466
        %v1469 = vsinq.f32.pop %v1466
        %vm1470 = vweird.f32 %v649
        %v1471 = vadd.s32 %v1467, 3
        %v1472 = vand.u32 %v1471, 3
        %vm1473 = vcmp.lt.s32.totalorder %v1472, 2
        %vm1474 = vcmp.eq.s32.totalorder %v1472, 0
        %v1475 = vxor.u32 %v1469, 2147483648
        %v1476 = vsel %vm1474, %v1468, %v1475
        %vm1477 = vcmp.eq.s32.totalorder %v1472, 2
        %v1478 = vxor.u32 %v1468, 2147483648
        %v1479 = vsel %vm1477, %v1478, %v1469
        %v1480 = vsel %vm1473, %v1476, %v1479
        %v1481 = vsel %vm1470, nan, %v1480
        %v1482 = vmul.f32 %v628, %v753
        %v1483 = vmul.f32 %v629, %v857
        %v1484 = vmul.f32 %v630, %v961
        %v1485 = vmul.f32 %v631, %v1065
        %v1486 = vmul.f32 %v632, %v1169
        %v1487 = vmul.f32 %v633, %v1273
        %v1488 = vmul.f32 %v634, %v1377
        %v1489 = vmul.f32 %v635, %v1481
        %1490 = vst [vmem:[%s164] sm:$0xff] %v1482
        %1491 = vst [vmem:[%s164 + $0x8] sm:$0xff] %v1483
        %1492 = vst [vmem:[%s164 + $0x10] sm:$0xff] %v1484
        %1493 = vst [vmem:[%s164 + $0x18] sm:$0xff] %v1485
        %1494 = vst [vmem:[%s164 + $0x20] sm:$0xff] %v1486
        %1495 = vst [vmem:[%s164 + $0x28] sm:$0xff] %v1487
        %1496 = vst [vmem:[%s164 + $0x30] sm:$0xff] %v1488
        %1497 = vst [vmem:[%s164 + $0x38] sm:$0xff] %v1489
        %s1498 = sand.u32 %s93, 1
        %s1499 = scalar_lea.sflag [#allocation3], %s1498
        %s1500 = sand.u32 %s93, 1
        %s1501 = smul.addr %s1500, 64
        %s1502 = scalar_lea.vmem [#allocation2], %s1501
        // Predicated region
        $region33: #{tpu_custom_call.1} parent=31 // pred_check
          %p1503 = pneg %p103
        $region34: #{tpu_custom_call.1} parent=31 // pred_check_branch
          %1505 = sbr.rel (%p1503) target = $region36
        $region35: #{tpu_custom_call.1} parent=31 // pred_region
          %s1506 = smul.u32 8, %s17
          %s1508 = ssub.s32 1024, 1024
          %1509 = vsyncadd %s1499, %s1508
          %s1510 = smul.addr %s1506, 128
          %s1511 = scalar_lea.hbm %s3, %s1510
          %s1512 = sshll.u32 %s1502, 4
          %s1513 = int_to_ptr.vmem [resolvable:$true] %s1512
          %1518 = dma.vmem_to_hbm [thread:$0]  %s1513, 1024, %s1511, %s1499, 128, 128, 8
        $region36: #{tpu_custom_call.1} parent=31 // pred_fallthru
          _
      $region32: #{tpu_custom_call.1} parent=5 // pred_fallthru
        _
      %p1519 = scmp.le.s32.totalorder 2, %s12
      // Predicated region
      $region37: #{tpu_custom_call.1} parent=5 // pred_check
        %p1520 = pneg %p1519
      $region38: #{tpu_custom_call.1} parent=5 // pred_check_branch
        %1522 = sbr.rel (%p1520) target = $region40
      $region39: #{tpu_custom_call.1} parent=5 // pred_region
        %s1523 = ssub.s32 %s12, 2
        // Predicated region
        $region41: #{tpu_custom_call.1} parent=39 // pred_check
          %p1524 = pneg %p109
        $region42: #{tpu_custom_call.1} parent=39 // pred_check_branch
          %1526 = sbr.rel (%p1524) target = $region44
        $region43: #{tpu_custom_call.1} parent=39 // pred_region
          %s1527 = sand.u32 %s94, 1
          %s1528 = scalar_lea.sflag [#allocation3], %s1527
          %s1529 = sand.u32 %s94, 1
          %s1530 = smul.addr %s1529, 64
          %s1531 = scalar_lea.vmem [#allocation2], %s1530
          %1532 = dma.done %s1528, 1024
        $region44: #{tpu_custom_call.1} parent=39 // pred_fallthru
          _
      $region40: #{tpu_custom_call.1} parent=5 // pred_fallthru
        _
    $region6: #{tpu_custom_call.1} parent=1 // loop_footer
      %s16 = sadd.s32 1, %s12
    $region7: #{tpu_custom_call.1} parent=1 // loop_footer_branch
      %11 = sbr.rel target = $region3
    $region8: #{tpu_custom_call.1} parent=1 // loop_exit
      _
    %1533 = vsyncpa [#allocation3], 1
    %s1534 = scalar_lea.sflag [#allocation3], 1
    %1535 = vsyncpa %s1534, 1

</llo_original>
